<compile_context>
chip_gen: v7x
topology: tpu7x:2x2x1
jax: 0.10.0
libtpu: 0.0.40
codegen_flags: <defaults>
</compile_context>

<pallas_src>
import functools

import jax
import jax.numpy as jnp
from jax.experimental import pallas as pl
from jax.experimental.pallas import tpu as pltpu


def _residual_block_kernel(x_ref, w1_ref, b1_ref, w2_ref, b2_ref, out_ref,
                           pad_ref, *, H, W, C, P):
    """relu(conv2(relu(conv1(x))) + x) for one image.

    x_ref   : (1, C, H*W)       input image (channels on sublanes, spatial on lanes)
    w*_ref  : (9, C, C)         conv weights, tap-major: w[kh*3+kw] = (Cout, Cin)
    b*_ref  : (C, 1)            conv biases
    out_ref : (1, C, H*W)       output image
    pad_ref : (C, P + H*W + P)  scratch: zero-end-padded flat slab, reused as the
                                input of conv1 and then of conv2
    """
    f32 = jnp.float32
    HW = H * W

    # Column masks for the horizontal boundary: in the flattened layout,
    # x[h, -1] aliases x[h-1, W-1] and x[h, W] aliases x[h+1, 0], so taps with
    # dx == 0 / dx == 2 must zero the first / last column of every row.
    wpos = jax.lax.broadcasted_iota(jnp.int32, (C, HW), 1) % W
    left_ok = wpos != 0           # valid source column for dx == 0 taps
    right_ok = wpos != (W - 1)    # valid source column for dx == 2 taps

    def conv3x3(w_ref, b_ref):
        # 9 batched (C,C)@(C,HW) matmuls; tap (dy,dx) is a static lane-offset
        # slice of the padded flat slab shifted by (dy-1)*W + (dx-1).
        acc = jnp.zeros((C, HW), f32)
        for t in range(9):
            dy, dx = t // 3, t % 3
            s = (dy - 1) * W + (dx - 1)
            slab = pad_ref[:, P + s:P + s + HW]            # (C, HW)
            if dx == 0:
                slab = jnp.where(left_ok, slab, 0.0)
            elif dx == 2:
                slab = jnp.where(right_ok, slab, 0.0)
            acc = acc + jnp.dot(w_ref[t], slab, preferred_element_type=f32)
        return acc + b_ref[...]                            # (C, HW) + (C, 1)

    # Zero only the halo, every step (tiny vs. the image; unconditional so each
    # TensorCore is correct when the grid is megacore-sharded).
    zeros_halo = jnp.zeros((C, P), f32)
    pad_ref[:, :P] = zeros_halo
    pad_ref[:, P + HW:] = zeros_halo

    x = x_ref[0]                                           # (C, HW) original input

    # conv1 + relu  (interior store is lane-aligned: P is a multiple of 128)
    pad_ref[:, P:P + HW] = x
    h1 = jnp.maximum(conv3x3(w1_ref, b1_ref), 0.0)

    # conv2 + residual add + relu  (scratch interior overwritten with h1)
    pad_ref[:, P:P + HW] = h1
    h2 = conv3x3(w2_ref, b2_ref)
    out_ref[0] = jnp.maximum(h2 + x, 0.0).astype(out_ref.dtype)


def residual_block(x_nchw, w1, b1, w2, b2):
    """x_nchw: (N, C, H, W); w*: (Cout, Cin, 3, 3) PyTorch layout; b*: (C,)."""
    N, C, H, W = x_nchw.shape
    HW = H * W
    # Flat-axis halo: >= W+1 (largest tap shift), rounded to a multiple of 128
    # so the interior scratch store is lane-aligned.
    P = ((W + 1 + 127) // 128) * 128

    x = x_nchw.reshape(N, C, HW).astype(jnp.float32)       # no transpose, no pad
    w1k = jnp.transpose(w1, (2, 3, 0, 1)).reshape(9, C, C).astype(jnp.float32)
    w2k = jnp.transpose(w2, (2, 3, 0, 1)).reshape(9, C, C).astype(jnp.float32)
    b1k = b1.reshape(C, 1).astype(jnp.float32)
    b2k = b2.reshape(C, 1).astype(jnp.float32)

    kernel = functools.partial(_residual_block_kernel, H=H, W=W, C=C, P=P)

    # VMEM budget: double-buffered in/out blocks + weights + the flat scratch.
    est = 4 * (2 * 2 * C * HW + C * (2 * P + HW) + 2 * (9 * C * C + C))
    vmem_limit = int(min(64 * 1024 * 1024, max(32 * 1024 * 1024, 2 * est)))

    # TODO(synk): for large images on v7x (64 MiB VMEM/TC), add an H-tile grid
    # axis with a 1-row halo instead of one whole image per grid step.
    out_flat = pl.pallas_call(
        kernel,
        out_shape=jax.ShapeDtypeStruct((N, C, HW), jnp.float32),
        grid_spec=pltpu.PrefetchScalarGridSpec(
            num_scalar_prefetch=0,
            grid=(N,),                                     # one image per grid step
            in_specs=[
                pl.BlockSpec((1, C, HW), lambda n: (n, 0, 0)),
                pl.BlockSpec((9, C, C), lambda n: (0, 0, 0)),
                pl.BlockSpec((C, 1), lambda n: (0, 0)),
                pl.BlockSpec((9, C, C), lambda n: (0, 0, 0)),
                pl.BlockSpec((C, 1), lambda n: (0, 0)),
            ],
            out_specs=pl.BlockSpec((1, C, HW), lambda n: (n, 0, 0)),
            scratch_shapes=[pltpu.VMEM((C, 2 * P + HW), jnp.float32)],
        ),
        compiler_params=pltpu.CompilerParams(
            dimension_semantics=("parallel",),             # megacore-shard N (v7x)
            vmem_limit_bytes=vmem_limit,
        ),
    )(x, w1k, b1k, w2k, b2k)

    return out_flat.reshape(N, C, H, W)


def _reference_forward(x, w1, b1, w2, b2):
    """Pure-JAX NCHW reference mirroring the PyTorch module."""
    dn = jax.lax.conv_dimension_numbers(x.shape, w1.shape, ("NCHW", "OIHW", "NCHW"))
    y = jax.lax.conv_general_dilated(x, w1, (1, 1), "SAME", dimension_numbers=dn)
    y = y + b1[None, :, None, None]
    y = jax.nn.relu(y)
    y = jax.lax.conv_general_dilated(y, w2, (1, 1), "SAME", dimension_numbers=dn)
    y = y + b2[None, :, None, None]
    return jax.nn.relu(y + x)


if __name__ == "__main__":
    N, C, H, W = 2, 4, 16, 16
    key = jax.random.PRNGKey(0)
    kx, kw1, kb1, kw2, kb2 = jax.random.split(key, 5)

    # Deterministic parameter init (PyTorch Conv2d-style uniform bounds).
    bound = 1.0 / (C * 3 * 3) ** 0.5
    x = jax.random.normal(kx, (N, C, H, W), jnp.float32)
    w1 = jax.random.uniform(kw1, (C, C, 3, 3), jnp.float32, -bound, bound)
    b1 = jax.random.uniform(kb1, (C,), jnp.float32, -bound, bound)
    w2 = jax.random.uniform(kw2, (C, C, 3, 3), jnp.float32, -bound, bound)
    b2 = jax.random.uniform(kb2, (C,), jnp.float32, -bound, bound)

    out = residual_block(x, w1, b1, w2, b2)
    out = jax.block_until_ready(out)

    ref = _reference_forward(x, w1, b1, w2, b2)
    assert out.shape == (N, C, H, W) and out.dtype == jnp.float32
    assert jnp.allclose(out, ref, atol=1e-4, rtol=1e-4), "mismatch vs reference"

    print("KERNEL_OK")
</pallas_src>

<mosaic_0001>
module attributes {stable_mosaic.version = 11 : i64} {
  func.func @_residual_block_kernel(%arg0: i32, %arg1: memref<1x4x256xf32, #tpu.memory_space<vmem>>, %arg2: memref<9x4x4xf32, #tpu.memory_space<vmem>>, %arg3: memref<4x1xf32, #tpu.memory_space<vmem>>, %arg4: memref<9x4x4xf32, #tpu.memory_space<vmem>>, %arg5: memref<4x1xf32, #tpu.memory_space<vmem>>, %arg6: memref<1x4x256xf32, #tpu.memory_space<vmem>>, %arg7: memref<4x512xf32, #tpu.memory_space<vmem>>) attributes {dimension_semantics = [#tpu.dimension_semantics<parallel>], iteration_bounds = array<i64: 2>, scalar_prefetch = 0 : i64, scratch_operands = 1 : i64, tpu.core_type = #tpu.core_type<tc>, window_params = [{transform_indices = @transform_0, window_bounds = array<i64: 1, 4, 256>}, {pipeline_mode = #tpu.pipeline_mode<synchronous>, transform_indices = @transform_1, window_bounds = array<i64: 9, 4, 4>}, {pipeline_mode = #tpu.pipeline_mode<synchronous>, transform_indices = @transform_2, window_bounds = array<i64: 4, 1>}, {pipeline_mode = #tpu.pipeline_mode<synchronous>, transform_indices = @transform_3, window_bounds = array<i64: 9, 4, 4>}, {pipeline_mode = #tpu.pipeline_mode<synchronous>, transform_indices = @transform_4, window_bounds = array<i64: 4, 1>}, {transform_indices = @transform_5, window_bounds = array<i64: 1, 4, 256>}]} {
    %0 = tpu.iota {dimensions = array<i32: 1>} : vector<4x256xi32>
    %c16_i32 = arith.constant 16 : i32
    %c0_i32 = arith.constant 0 : i32
    %1 = arith.cmpi eq, %c16_i32, %c0_i32 : i32
    %c1_i32 = arith.constant 1 : i32
    %2 = arith.select %1, %c1_i32, %c16_i32 : i32
    %3 = vector.broadcast %2 : i32 to vector<4x256xi32>
    %4 = arith.remsi %0, %3 : vector<4x256xi32>
    %c0_i32_0 = arith.constant 0 : i32
    %5 = vector.broadcast %c0_i32_0 : i32 to vector<4x256xi32>
    %6 = arith.cmpi ne, %4, %5 : vector<4x256xi32>
    %c0_i32_1 = arith.constant 0 : i32
    %7 = vector.broadcast %c0_i32_1 : i32 to vector<4x256xi32>
    %8 = arith.cmpi slt, %4, %7 : vector<4x256xi32>
    %c0_i32_2 = arith.constant 0 : i32
    %9 = arith.cmpi slt, %2, %c0_i32_2 : i32
    %10 = vector.broadcast %9 : i1 to vector<4x256xi1>
    %11 = vector.broadcast %10 : vector<4x256xi1> to vector<4x256xi1>
    %12 = arith.xori %8, %11 : vector<4x256xi1>
    %13 = arith.andi %12, %6 : vector<4x256xi1>
    %14 = vector.broadcast %2 : i32 to vector<4x256xi32>
    %15 = arith.addi %4, %14 : vector<4x256xi32>
    %16 = arith.select %13, %15, %4 : vector<4x256xi1>, vector<4x256xi32>
    %c0_i32_3 = arith.constant 0 : i32
    %17 = vector.broadcast %c0_i32_3 : i32 to vector<4x256xi32>
    %18 = arith.cmpi ne, %16, %17 : vector<4x256xi32>
    %c15_i32 = arith.constant 15 : i32
    %19 = vector.broadcast %c15_i32 : i32 to vector<4x256xi32>
    %20 = arith.cmpi ne, %16, %19 : vector<4x256xi32>
    %cst = arith.constant 0.000000e+00 : f32
    %21 = vector.broadcast %cst : f32 to vector<4x128xf32>
    %c0 = arith.constant 0 : index
    %c0_4 = arith.constant 0 : index
    %22 = vector.load %arg7[%c0, %c0_4] : memref<4x512xf32, #tpu.memory_space<vmem>>, vector<4x128xf32>
    tpu.vector_store %arg7[%c0, %c0_4], %21 {strides = array<i32>} : memref<4x512xf32, #tpu.memory_space<vmem>>, vector<4x128xf32>,
    %c0_5 = arith.constant 0 : index
    %c384 = arith.constant 384 : index
    %23 = vector.load %arg7[%c0_5, %c384] : memref<4x512xf32, #tpu.memory_space<vmem>>, vector<4x128xf32>
    tpu.vector_store %arg7[%c0_5, %c384], %21 {strides = array<i32>} : memref<4x512xf32, #tpu.memory_space<vmem>>, vector<4x128xf32>,
    %c0_6 = arith.constant 0 : index
    %c0_7 = arith.constant 0 : index
    %c0_8 = arith.constant 0 : index
    %24 = vector.load %arg1[%c0_6, %c0_7, %c0_8] : memref<1x4x256xf32, #tpu.memory_space<vmem>>, vector<1x4x256xf32>
    %25 = vector.shape_cast %24 : vector<1x4x256xf32> to vector<4x256xf32>
    %c0_9 = arith.constant 0 : index
    %c128 = arith.constant 128 : index
    %26 = vector.load %arg7[%c0_9, %c128] : memref<4x512xf32, #tpu.memory_space<vmem>>, vector<4x256xf32>
    tpu.vector_store %arg7[%c0_9, %c128], %25 {strides = array<i32>} : memref<4x512xf32, #tpu.memory_space<vmem>>, vector<4x256xf32>,
    %cst_10 = arith.constant 0.000000e+00 : f32
    %27 = vector.broadcast %cst_10 : f32 to vector<4x256xf32>
    %c0_11 = arith.constant 0 : index
    %c111 = arith.constant 111 : index
    %28 = vector.load %arg7[%c0_11, %c111] : memref<4x512xf32, #tpu.memory_space<vmem>>, vector<4x256xf32>
    %cst_12 = arith.constant 0.000000e+00 : f32
    %29 = vector.broadcast %cst_12 : f32 to vector<4x256xf32>
    %30 = arith.select %18, %28, %29 : vector<4x256xi1>, vector<4x256xf32>
    %c0_13 = arith.constant 0 : index
    %c0_14 = arith.constant 0 : index
    %c0_15 = arith.constant 0 : index
    %31 = vector.load %arg2[%c0_13, %c0_14, %c0_15] : memref<9x4x4xf32, #tpu.memory_space<vmem>>, vector<1x4x4xf32>
    %32 = vector.shape_cast %31 : vector<1x4x4xf32> to vector<4x4xf32>
    %cst_16 = arith.constant dense<0.000000e+00> : vector<4x256xf32>
    %33 = tpu.matmul %32, %30, %cst_16 {dimension_numbers = #tpu.dot_dimension_numbers<[1], [0], [0], [1], [0, 0, 1, 1], [], []>} : vector<4x4xf32>, vector<4x256xf32>, vector<4x256xf32> -> vector<4x256xf32>
    %34 = arith.addf %27, %33 : vector<4x256xf32>
    %c0_17 = arith.constant 0 : index
    %c112 = arith.constant 112 : index
    %35 = vector.load %arg7[%c0_17, %c112] : memref<4x512xf32, #tpu.memory_space<vmem>>, vector<4x256xf32>
    %c1 = arith.constant 1 : index
    %c0_18 = arith.constant 0 : index
    %c0_19 = arith.constant 0 : index
    %36 = vector.load %arg2[%c1, %c0_18, %c0_19] : memref<9x4x4xf32, #tpu.memory_space<vmem>>, vector<1x4x4xf32>
    %37 = vector.shape_cast %36 : vector<1x4x4xf32> to vector<4x4xf32>
    %cst_20 = arith.constant dense<0.000000e+00> : vector<4x256xf32>
    %38 = tpu.matmul %37, %35, %cst_20 {dimension_numbers = #tpu.dot_dimension_numbers<[1], [0], [0], [1], [0, 0, 1, 1], [], []>} : vector<4x4xf32>, vector<4x256xf32>, vector<4x256xf32> -> vector<4x256xf32>
    %39 = arith.addf %34, %38 : vector<4x256xf32>
    %c0_21 = arith.constant 0 : index
    %c113 = arith.constant 113 : index
    %40 = vector.load %arg7[%c0_21, %c113] : memref<4x512xf32, #tpu.memory_space<vmem>>, vector<4x256xf32>
    %cst_22 = arith.constant 0.000000e+00 : f32
    %41 = vector.broadcast %cst_22 : f32 to vector<4x256xf32>
    %42 = arith.select %20, %40, %41 : vector<4x256xi1>, vector<4x256xf32>
    %c2 = arith.constant 2 : index
    %c0_23 = arith.constant 0 : index
    %c0_24 = arith.constant 0 : index
    %43 = vector.load %arg2[%c2, %c0_23, %c0_24] : memref<9x4x4xf32, #tpu.memory_space<vmem>>, vector<1x4x4xf32>
    %44 = vector.shape_cast %43 : vector<1x4x4xf32> to vector<4x4xf32>
    %cst_25 = arith.constant dense<0.000000e+00> : vector<4x256xf32>
    %45 = tpu.matmul %44, %42, %cst_25 {dimension_numbers = #tpu.dot_dimension_numbers<[1], [0], [0], [1], [0, 0, 1, 1], [], []>} : vector<4x4xf32>, vector<4x256xf32>, vector<4x256xf32> -> vector<4x256xf32>
    %46 = arith.addf %39, %45 : vector<4x256xf32>
    %c0_26 = arith.constant 0 : index
    %c127 = arith.constant 127 : index
    %47 = vector.load %arg7[%c0_26, %c127] : memref<4x512xf32, #tpu.memory_space<vmem>>, vector<4x256xf32>
    %cst_27 = arith.constant 0.000000e+00 : f32
    %48 = vector.broadcast %cst_27 : f32 to vector<4x256xf32>
    %49 = arith.select %18, %47, %48 : vector<4x256xi1>, vector<4x256xf32>
    %c3 = arith.constant 3 : index
    %c0_28 = arith.constant 0 : index
    %c0_29 = arith.constant 0 : index
    %50 = vector.load %arg2[%c3, %c0_28, %c0_29] : memref<9x4x4xf32, #tpu.memory_space<vmem>>, vector<1x4x4xf32>
    %51 = vector.shape_cast %50 : vector<1x4x4xf32> to vector<4x4xf32>
    %cst_30 = arith.constant dense<0.000000e+00> : vector<4x256xf32>
    %52 = tpu.matmul %51, %49, %cst_30 {dimension_numbers = #tpu.dot_dimension_numbers<[1], [0], [0], [1], [0, 0, 1, 1], [], []>} : vector<4x4xf32>, vector<4x256xf32>, vector<4x256xf32> -> vector<4x256xf32>
    %53 = arith.addf %46, %52 : vector<4x256xf32>
    %c0_31 = arith.constant 0 : index
    %c128_32 = arith.constant 128 : index
    %54 = vector.load %arg7[%c0_31, %c128_32] : memref<4x512xf32, #tpu.memory_space<vmem>>, vector<4x256xf32>
    %c4 = arith.constant 4 : index
    %c0_33 = arith.constant 0 : index
    %c0_34 = arith.constant 0 : index
    %55 = vector.load %arg2[%c4, %c0_33, %c0_34] : memref<9x4x4xf32, #tpu.memory_space<vmem>>, vector<1x4x4xf32>
    %56 = vector.shape_cast %55 : vector<1x4x4xf32> to vector<4x4xf32>
    %cst_35 = arith.constant dense<0.000000e+00> : vector<4x256xf32>
    %57 = tpu.matmul %56, %54, %cst_35 {dimension_numbers = #tpu.dot_dimension_numbers<[1], [0], [0], [1], [0, 0, 1, 1], [], []>} : vector<4x4xf32>, vector<4x256xf32>, vector<4x256xf32> -> vector<4x256xf32>
    %58 = arith.addf %53, %57 : vector<4x256xf32>
    %c0_36 = arith.constant 0 : index
    %c129 = arith.constant 129 : index
    %59 = vector.load %arg7[%c0_36, %c129] : memref<4x512xf32, #tpu.memory_space<vmem>>, vector<4x256xf32>
    %cst_37 = arith.constant 0.000000e+00 : f32
    %60 = vector.broadcast %cst_37 : f32 to vector<4x256xf32>
    %61 = arith.select %20, %59, %60 : vector<4x256xi1>, vector<4x256xf32>
    %c5 = arith.constant 5 : index
    %c0_38 = arith.constant 0 : index
    %c0_39 = arith.constant 0 : index
    %62 = vector.load %arg2[%c5, %c0_38, %c0_39] : memref<9x4x4xf32, #tpu.memory_space<vmem>>, vector<1x4x4xf32>
    %63 = vector.shape_cast %62 : vector<1x4x4xf32> to vector<4x4xf32>
    %cst_40 = arith.constant dense<0.000000e+00> : vector<4x256xf32>
    %64 = tpu.matmul %63, %61, %cst_40 {dimension_numbers = #tpu.dot_dimension_numbers<[1], [0], [0], [1], [0, 0, 1, 1], [], []>} : vector<4x4xf32>, vector<4x256xf32>, vector<4x256xf32> -> vector<4x256xf32>
    %65 = arith.addf %58, %64 : vector<4x256xf32>
    %c0_41 = arith.constant 0 : index
    %c143 = arith.constant 143 : index
    %66 = vector.load %arg7[%c0_41, %c143] : memref<4x512xf32, #tpu.memory_space<vmem>>, vector<4x256xf32>
    %cst_42 = arith.constant 0.000000e+00 : f32
    %67 = vector.broadcast %cst_42 : f32 to vector<4x256xf32>
    %68 = arith.select %18, %66, %67 : vector<4x256xi1>, vector<4x256xf32>
    %c6 = arith.constant 6 : index
    %c0_43 = arith.constant 0 : index
    %c0_44 = arith.constant 0 : index
    %69 = vector.load %arg2[%c6, %c0_43, %c0_44] : memref<9x4x4xf32, #tpu.memory_space<vmem>>, vector<1x4x4xf32>
    %70 = vector.shape_cast %69 : vector<1x4x4xf32> to vector<4x4xf32>
    %cst_45 = arith.constant dense<0.000000e+00> : vector<4x256xf32>
    %71 = tpu.matmul %70, %68, %cst_45 {dimension_numbers = #tpu.dot_dimension_numbers<[1], [0], [0], [1], [0, 0, 1, 1], [], []>} : vector<4x4xf32>, vector<4x256xf32>, vector<4x256xf32> -> vector<4x256xf32>
    %72 = arith.addf %65, %71 : vector<4x256xf32>
    %c0_46 = arith.constant 0 : index
    %c144 = arith.constant 144 : index
    %73 = vector.load %arg7[%c0_46, %c144] : memref<4x512xf32, #tpu.memory_space<vmem>>, vector<4x256xf32>
    %c7 = arith.constant 7 : index
    %c0_47 = arith.constant 0 : index
    %c0_48 = arith.constant 0 : index
    %74 = vector.load %arg2[%c7, %c0_47, %c0_48] : memref<9x4x4xf32, #tpu.memory_space<vmem>>, vector<1x4x4xf32>
    %75 = vector.shape_cast %74 : vector<1x4x4xf32> to vector<4x4xf32>
    %cst_49 = arith.constant dense<0.000000e+00> : vector<4x256xf32>
    %76 = tpu.matmul %75, %73, %cst_49 {dimension_numbers = #tpu.dot_dimension_numbers<[1], [0], [0], [1], [0, 0, 1, 1], [], []>} : vector<4x4xf32>, vector<4x256xf32>, vector<4x256xf32> -> vector<4x256xf32>
    %77 = arith.addf %72, %76 : vector<4x256xf32>
    %c0_50 = arith.constant 0 : index
    %c145 = arith.constant 145 : index
    %78 = vector.load %arg7[%c0_50, %c145] : memref<4x512xf32, #tpu.memory_space<vmem>>, vector<4x256xf32>
    %cst_51 = arith.constant 0.000000e+00 : f32
    %79 = vector.broadcast %cst_51 : f32 to vector<4x256xf32>
    %80 = arith.select %20, %78, %79 : vector<4x256xi1>, vector<4x256xf32>
    %c8 = arith.constant 8 : index
    %c0_52 = arith.constant 0 : index
    %c0_53 = arith.constant 0 : index
    %81 = vector.load %arg2[%c8, %c0_52, %c0_53] : memref<9x4x4xf32, #tpu.memory_space<vmem>>, vector<1x4x4xf32>
    %82 = vector.shape_cast %81 : vector<1x4x4xf32> to vector<4x4xf32>
    %cst_54 = arith.constant dense<0.000000e+00> : vector<4x256xf32>
    %83 = tpu.matmul %82, %80, %cst_54 {dimension_numbers = #tpu.dot_dimension_numbers<[1], [0], [0], [1], [0, 0, 1, 1], [], []>} : vector<4x4xf32>, vector<4x256xf32>, vector<4x256xf32> -> vector<4x256xf32>
    %84 = arith.addf %77, %83 : vector<4x256xf32>
    %c0_55 = arith.constant 0 : index
    %c0_56 = arith.constant 0 : index
    %85 = vector.load %arg3[%c0_55, %c0_56] : memref<4x1xf32, #tpu.memory_space<vmem>>, vector<4x1xf32>
    %86 = vector.broadcast %85 : vector<4x1xf32> to vector<4x256xf32>
    %87 = arith.addf %84, %86 : vector<4x256xf32>
    %cst_57 = arith.constant 0.000000e+00 : f32
    %88 = vector.broadcast %cst_57 : f32 to vector<4x256xf32>
    %89 = arith.maximumf %87, %88 : vector<4x256xf32>
    %c0_58 = arith.constant 0 : index
    %c128_59 = arith.constant 128 : index
    %90 = vector.load %arg7[%c0_58, %c128_59] : memref<4x512xf32, #tpu.memory_space<vmem>>, vector<4x256xf32>
    tpu.vector_store %arg7[%c0_58, %c128_59], %89 {strides = array<i32>} : memref<4x512xf32, #tpu.memory_space<vmem>>, vector<4x256xf32>,
    %cst_60 = arith.constant 0.000000e+00 : f32
    %91 = vector.broadcast %cst_60 : f32 to vector<4x256xf32>
    %c0_61 = arith.constant 0 : index
    %c111_62 = arith.constant 111 : index
    %92 = vector.load %arg7[%c0_61, %c111_62] : memref<4x512xf32, #tpu.memory_space<vmem>>, vector<4x256xf32>
    %cst_63 = arith.constant 0.000000e+00 : f32
    %93 = vector.broadcast %cst_63 : f32 to vector<4x256xf32>
    %94 = arith.select %18, %92, %93 : vector<4x256xi1>, vector<4x256xf32>
    %c0_64 = arith.constant 0 : index
    %c0_65 = arith.constant 0 : index
    %c0_66 = arith.constant 0 : index
    %95 = vector.load %arg4[%c0_64, %c0_65, %c0_66] : memref<9x4x4xf32, #tpu.memory_space<vmem>>, vector<1x4x4xf32>
    %96 = vector.shape_cast %95 : vector<1x4x4xf32> to vector<4x4xf32>
    %cst_67 = arith.constant dense<0.000000e+00> : vector<4x256xf32>
    %97 = tpu.matmul %96, %94, %cst_67 {dimension_numbers = #tpu.dot_dimension_numbers<[1], [0], [0], [1], [0, 0, 1, 1], [], []>} : vector<4x4xf32>, vector<4x256xf32>, vector<4x256xf32> -> vector<4x256xf32>
    %98 = arith.addf %91, %97 : vector<4x256xf32>
    %c0_68 = arith.constant 0 : index
    %c112_69 = arith.constant 112 : index
    %99 = vector.load %arg7[%c0_68, %c112_69] : memref<4x512xf32, #tpu.memory_space<vmem>>, vector<4x256xf32>
    %c1_70 = arith.constant 1 : index
    %c0_71 = arith.constant 0 : index
    %c0_72 = arith.constant 0 : index
    %100 = vector.load %arg4[%c1_70, %c0_71, %c0_72] : memref<9x4x4xf32, #tpu.memory_space<vmem>>, vector<1x4x4xf32>
    %101 = vector.shape_cast %100 : vector<1x4x4xf32> to vector<4x4xf32>
    %cst_73 = arith.constant dense<0.000000e+00> : vector<4x256xf32>
    %102 = tpu.matmul %101, %99, %cst_73 {dimension_numbers = #tpu.dot_dimension_numbers<[1], [0], [0], [1], [0, 0, 1, 1], [], []>} : vector<4x4xf32>, vector<4x256xf32>, vector<4x256xf32> -> vector<4x256xf32>
    %103 = arith.addf %98, %102 : vector<4x256xf32>
    %c0_74 = arith.constant 0 : index
    %c113_75 = arith.constant 113 : index
    %104 = vector.load %arg7[%c0_74, %c113_75] : memref<4x512xf32, #tpu.memory_space<vmem>>, vector<4x256xf32>
    %cst_76 = arith.constant 0.000000e+00 : f32
    %105 = vector.broadcast %cst_76 : f32 to vector<4x256xf32>
    %106 = arith.select %20, %104, %105 : vector<4x256xi1>, vector<4x256xf32>
    %c2_77 = arith.constant 2 : index
    %c0_78 = arith.constant 0 : index
    %c0_79 = arith.constant 0 : index
    %107 = vector.load %arg4[%c2_77, %c0_78, %c0_79] : memref<9x4x4xf32, #tpu.memory_space<vmem>>, vector<1x4x4xf32>
    %108 = vector.shape_cast %107 : vector<1x4x4xf32> to vector<4x4xf32>
    %cst_80 = arith.constant dense<0.000000e+00> : vector<4x256xf32>
    %109 = tpu.matmul %108, %106, %cst_80 {dimension_numbers = #tpu.dot_dimension_numbers<[1], [0], [0], [1], [0, 0, 1, 1], [], []>} : vector<4x4xf32>, vector<4x256xf32>, vector<4x256xf32> -> vector<4x256xf32>
    %110 = arith.addf %103, %109 : vector<4x256xf32>
    %c0_81 = arith.constant 0 : index
    %c127_82 = arith.constant 127 : index
    %111 = vector.load %arg7[%c0_81, %c127_82] : memref<4x512xf32, #tpu.memory_space<vmem>>, vector<4x256xf32>
    %cst_83 = arith.constant 0.000000e+00 : f32
    %112 = vector.broadcast %cst_83 : f32 to vector<4x256xf32>
    %113 = arith.select %18, %111, %112 : vector<4x256xi1>, vector<4x256xf32>
    %c3_84 = arith.constant 3 : index
    %c0_85 = arith.constant 0 : index
    %c0_86 = arith.constant 0 : index
    %114 = vector.load %arg4[%c3_84, %c0_85, %c0_86] : memref<9x4x4xf32, #tpu.memory_space<vmem>>, vector<1x4x4xf32>
    %115 = vector.shape_cast %114 : vector<1x4x4xf32> to vector<4x4xf32>
    %cst_87 = arith.constant dense<0.000000e+00> : vector<4x256xf32>
    %116 = tpu.matmul %115, %113, %cst_87 {dimension_numbers = #tpu.dot_dimension_numbers<[1], [0], [0], [1], [0, 0, 1, 1], [], []>} : vector<4x4xf32>, vector<4x256xf32>, vector<4x256xf32> -> vector<4x256xf32>
    %117 = arith.addf %110, %116 : vector<4x256xf32>
    %c0_88 = arith.constant 0 : index
    %c128_89 = arith.constant 128 : index
    %118 = vector.load %arg7[%c0_88, %c128_89] : memref<4x512xf32, #tpu.memory_space<vmem>>, vector<4x256xf32>
    %c4_90 = arith.constant 4 : index
    %c0_91 = arith.constant 0 : index
    %c0_92 = arith.constant 0 : index
    %119 = vector.load %arg4[%c4_90, %c0_91, %c0_92] : memref<9x4x4xf32, #tpu.memory_space<vmem>>, vector<1x4x4xf32>
    %120 = vector.shape_cast %119 : vector<1x4x4xf32> to vector<4x4xf32>
    %cst_93 = arith.constant dense<0.000000e+00> : vector<4x256xf32>
    %121 = tpu.matmul %120, %118, %cst_93 {dimension_numbers = #tpu.dot_dimension_numbers<[1], [0], [0], [1], [0, 0, 1, 1], [], []>} : vector<4x4xf32>, vector<4x256xf32>, vector<4x256xf32> -> vector<4x256xf32>
    %122 = arith.addf %117, %121 : vector<4x256xf32>
    %c0_94 = arith.constant 0 : index
    %c129_95 = arith.constant 129 : index
    %123 = vector.load %arg7[%c0_94, %c129_95] : memref<4x512xf32, #tpu.memory_space<vmem>>, vector<4x256xf32>
    %cst_96 = arith.constant 0.000000e+00 : f32
    %124 = vector.broadcast %cst_96 : f32 to vector<4x256xf32>
    %125 = arith.select %20, %123, %124 : vector<4x256xi1>, vector<4x256xf32>
    %c5_97 = arith.constant 5 : index
    %c0_98 = arith.constant 0 : index
    %c0_99 = arith.constant 0 : index
    %126 = vector.load %arg4[%c5_97, %c0_98, %c0_99] : memref<9x4x4xf32, #tpu.memory_space<vmem>>, vector<1x4x4xf32>
    %127 = vector.shape_cast %126 : vector<1x4x4xf32> to vector<4x4xf32>
    %cst_100 = arith.constant dense<0.000000e+00> : vector<4x256xf32>
    %128 = tpu.matmul %127, %125, %cst_100 {dimension_numbers = #tpu.dot_dimension_numbers<[1], [0], [0], [1], [0, 0, 1, 1], [], []>} : vector<4x4xf32>, vector<4x256xf32>, vector<4x256xf32> -> vector<4x256xf32>
    %129 = arith.addf %122, %128 : vector<4x256xf32>
    %c0_101 = arith.constant 0 : index
    %c143_102 = arith.constant 143 : index
    %130 = vector.load %arg7[%c0_101, %c143_102] : memref<4x512xf32, #tpu.memory_space<vmem>>, vector<4x256xf32>
    %cst_103 = arith.constant 0.000000e+00 : f32
    %131 = vector.broadcast %cst_103 : f32 to vector<4x256xf32>
    %132 = arith.select %18, %130, %131 : vector<4x256xi1>, vector<4x256xf32>
    %c6_104 = arith.constant 6 : index
    %c0_105 = arith.constant 0 : index
    %c0_106 = arith.constant 0 : index
    %133 = vector.load %arg4[%c6_104, %c0_105, %c0_106] : memref<9x4x4xf32, #tpu.memory_space<vmem>>, vector<1x4x4xf32>
    %134 = vector.shape_cast %133 : vector<1x4x4xf32> to vector<4x4xf32>
    %cst_107 = arith.constant dense<0.000000e+00> : vector<4x256xf32>
    %135 = tpu.matmul %134, %132, %cst_107 {dimension_numbers = #tpu.dot_dimension_numbers<[1], [0], [0], [1], [0, 0, 1, 1], [], []>} : vector<4x4xf32>, vector<4x256xf32>, vector<4x256xf32> -> vector<4x256xf32>
    %136 = arith.addf %129, %135 : vector<4x256xf32>
    %c0_108 = arith.constant 0 : index
    %c144_109 = arith.constant 144 : index
    %137 = vector.load %arg7[%c0_108, %c144_109] : memref<4x512xf32, #tpu.memory_space<vmem>>, vector<4x256xf32>
    %c7_110 = arith.constant 7 : index
    %c0_111 = arith.constant 0 : index
    %c0_112 = arith.constant 0 : index
    %138 = vector.load %arg4[%c7_110, %c0_111, %c0_112] : memref<9x4x4xf32, #tpu.memory_space<vmem>>, vector<1x4x4xf32>
    %139 = vector.shape_cast %138 : vector<1x4x4xf32> to vector<4x4xf32>
    %cst_113 = arith.constant dense<0.000000e+00> : vector<4x256xf32>
    %140 = tpu.matmul %139, %137, %cst_113 {dimension_numbers = #tpu.dot_dimension_numbers<[1], [0], [0], [1], [0, 0, 1, 1], [], []>} : vector<4x4xf32>, vector<4x256xf32>, vector<4x256xf32> -> vector<4x256xf32>
    %141 = arith.addf %136, %140 : vector<4x256xf32>
    %c0_114 = arith.constant 0 : index
    %c145_115 = arith.constant 145 : index
    %142 = vector.load %arg7[%c0_114, %c145_115] : memref<4x512xf32, #tpu.memory_space<vmem>>, vector<4x256xf32>
    %cst_116 = arith.constant 0.000000e+00 : f32
    %143 = vector.broadcast %cst_116 : f32 to vector<4x256xf32>
    %144 = arith.select %20, %142, %143 : vector<4x256xi1>, vector<4x256xf32>
    %c8_117 = arith.constant 8 : index
    %c0_118 = arith.constant 0 : index
    %c0_119 = arith.constant 0 : index
    %145 = vector.load %arg4[%c8_117, %c0_118, %c0_119] : memref<9x4x4xf32, #tpu.memory_space<vmem>>, vector<1x4x4xf32>
    %146 = vector.shape_cast %145 : vector<1x4x4xf32> to vector<4x4xf32>
    %cst_120 = arith.constant dense<0.000000e+00> : vector<4x256xf32>
    %147 = tpu.matmul %146, %144, %cst_120 {dimension_numbers = #tpu.dot_dimension_numbers<[1], [0], [0], [1], [0, 0, 1, 1], [], []>} : vector<4x4xf32>, vector<4x256xf32>, vector<4x256xf32> -> vector<4x256xf32>
    %148 = arith.addf %141, %147 : vector<4x256xf32>
    %c0_121 = arith.constant 0 : index
    %c0_122 = arith.constant 0 : index
    %149 = vector.load %arg5[%c0_121, %c0_122] : memref<4x1xf32, #tpu.memory_space<vmem>>, vector<4x1xf32>
    %150 = vector.broadcast %149 : vector<4x1xf32> to vector<4x256xf32>
    %151 = arith.addf %148, %150 : vector<4x256xf32>
    %152 = arith.addf %151, %25 : vector<4x256xf32>
    %cst_123 = arith.constant 0.000000e+00 : f32
    %153 = vector.broadcast %cst_123 : f32 to vector<4x256xf32>
    %154 = arith.maximumf %152, %153 : vector<4x256xf32>
    %c0_124 = arith.constant 0 : index
    %c0_125 = arith.constant 0 : index
    %c0_126 = arith.constant 0 : index
    %155 = vector.load %arg6[%c0_124, %c0_125, %c0_126] : memref<1x4x256xf32, #tpu.memory_space<vmem>>, vector<1x4x256xf32>
    %156 = vector.shape_cast %155 : vector<1x4x256xf32> to vector<4x256xf32>
    %157 = vector.shape_cast %154 : vector<4x256xf32> to vector<1x4x256xf32>
    tpu.vector_store %arg6[%c0_124, %c0_125, %c0_126], %157 {strides = array<i32>} : memref<1x4x256xf32, #tpu.memory_space<vmem>>, vector<1x4x256xf32>,
    return
  }
  func.func @transform_0(%arg0: i32) -> (i32, i32, i32) {
    %c0_i32 = arith.constant 0 : i32
    %c0_i32_0 = arith.constant 0 : i32
    %c0_i32_1 = arith.constant 0 : i32
    return %arg0, %c0_i32, %c0_i32_0 : i32, i32, i32
  }
  func.func @transform_1(%arg0: i32) -> (i32, i32, i32) {
    %c0_i32 = arith.constant 0 : i32
    %c0_i32_0 = arith.constant 0 : i32
    %c0_i32_1 = arith.constant 0 : i32
    %c0_i32_2 = arith.constant 0 : i32
    return %c0_i32, %c0_i32_0, %c0_i32_1 : i32, i32, i32
  }
  func.func @transform_2(%arg0: i32) -> (i32, i32) {
    %c0_i32 = arith.constant 0 : i32
    %c0_i32_0 = arith.constant 0 : i32
    %c0_i32_1 = arith.constant 0 : i32
    return %c0_i32, %c0_i32_0 : i32, i32
  }
  func.func @transform_3(%arg0: i32) -> (i32, i32, i32) {
    %c0_i32 = arith.constant 0 : i32
    %c0_i32_0 = arith.constant 0 : i32
    %c0_i32_1 = arith.constant 0 : i32
    %c0_i32_2 = arith.constant 0 : i32
    return %c0_i32, %c0_i32_0, %c0_i32_1 : i32, i32, i32
  }
  func.func @transform_4(%arg0: i32) -> (i32, i32) {
    %c0_i32 = arith.constant 0 : i32
    %c0_i32_0 = arith.constant 0 : i32
    %c0_i32_1 = arith.constant 0 : i32
    return %c0_i32, %c0_i32_0 : i32, i32
  }
  func.func @transform_5(%arg0: i32) -> (i32, i32, i32) {
    %c0_i32 = arith.constant 0 : i32
    %c0_i32_0 = arith.constant 0 : i32
    %c0_i32_1 = arith.constant 0 : i32
    return %arg0, %c0_i32, %c0_i32_0 : i32, i32, i32
  }
}

</mosaic_0001>

<llo_original>
// kernel: tpu_custom_call.1
$region0: #{tpu_custom_call.1}
  #allocation0 [shape = 'u32[]', space=smem, size = 0x4, offset = 0x4, fixed_abs, tag = 'smem constant byte address 0x4 - core index']
  #allocation1 [shape = 'u32[144,128]{1,0:T(1,128)}', space=vmem, size = 0x12000, scoped, tag = 'internal scratch']
  #allocation2 [shape = 'f32[4,512]{1,0:T(4,128)}', space=vmem, size = 0x2000, scoped, tag = 'scratch operand']
  %s0 = inlined_call_operand.vmem [shape: f32[2,4,256], index: 0, kind: input, shape index: {}]
  %s1 = inlined_call_operand.vmem [shape: f32[9,4,4], index: 1, kind: input, shape index: {}]
  %s2 = inlined_call_operand.vmem [shape: f32[4,1], index: 2, kind: input, shape index: {}]
  %s3 = inlined_call_operand.vmem [shape: f32[9,4,4], index: 3, kind: input, shape index: {}]
  %s4 = inlined_call_operand.vmem [shape: f32[4,1], index: 4, kind: input, shape index: {}]
  %s5 = inlined_call_operand.hbm [shape: f32[2,4,256], index: 5, kind: output, shape index: {}]
  %s6 = sld [smem:[#allocation0]]
  $region53: #{tpu_custom_call.1} parent=0
    _
  %s8 = ssub.s32 1, %s6
  %s9 = scalar_select 0, %s8, %s6
  $region1: #{tpu_custom_call.1} parent=0
    #allocation3 [shape = 'u8[8192]{0}', space=vmem, size = 0x2000, scoped, tag = 'output window, operand 0']
    #allocation4 [shape = 's32[2]{0}', space=sflag, size = 0x8, scoped, tag = 'scoped memory for tpu_custom_call.1']
    %10 = vsyncpa [#allocation4], 0
    %s11 = scalar_lea.sflag [#allocation4], 1
    %12 = vsyncpa %s11, 0
    loop: start=0, step=1, limit=4
    $region2: #{tpu_custom_call.1} parent=1 // loop_pre_header
      _
    $region3: #{tpu_custom_call.1} parent=1 // loop_header
      %s14 = sphi 0, %s18
      %p15 = scmp.ge.s32.totalorder %s14, 4
      %s24 = sphi 0, %s26
      %s27 = sphi 0, %s24
      %s28 = sphi 0, %s27
      %s44 = sphi 0, %s28
      %s48 = sphi 0, %s48
      %s50 = sphi 0, %s48
      %s51 = sphi 0, %s50
      %s65 = sphi 0, %s51
      %s69 = sphi 0, %s69
      %s71 = sphi 0, %s69
      %s72 = sphi 0, %s71
      %s86 = sphi 0, %s72
      %s90 = sphi 0, %s90
      %s92 = sphi 0, %s90
      %s93 = sphi 0, %s92
      %s107 = sphi 0, %s93
      %s111 = sphi 0, %s111
      %s113 = sphi 0, %s111
      %s114 = sphi 0, %s113
      %s128 = sphi 0, %s114
      %s134 = sphi 0, %s136
      %s137 = sphi 0, %s134
      %s138 = sphi 0, %s137
      %s154 = sphi 0, %s138
    $region4: #{tpu_custom_call.1} parent=1 // loop_header_branch
      %17 = sbr.rel (%p15) target = $region8
    $region5: #{tpu_custom_call.1} parent=1 // loop_body
      %s19 = ssub.s32 %s14, 1
      %s20 = ssub.s32 %s14, 2
      %s21 = sadd.s32 %s14, 1
      %s22 = ssub.s32 %s14, %s21
      %p23 = scmp.eq.s32.totalorder %s22, 0
      %s25 = sadd.s32 %s24, 1
      %s26 = scalar_select %p23, %s24, %s25
      %p29 = pneg %p23
      %p30 = scmp.eq.s32.totalorder %s14, 1
      %p31 = por %p29, %p30
      %p32 = scmp.ne.s32.totalorder %s24, %s27
      %p33 = scmp.eq.s32.totalorder %s14, 0
      %p34 = por %p32, %p33
      %p35 = scmp.ne.s32.totalorder %s24, %s27
      %p36 = scmp.eq.s32.totalorder %s19, 1
      %p37 = por %p35, %p36
      %p38 = scmp.ne.s32.totalorder %s27, %s28
      %p39 = scmp.eq.s32.totalorder %s19, 0
      %p40 = por %p38, %p39
      %p41 = scmp.ne.s32.totalorder %s27, %s28
      %p42 = scmp.eq.s32.totalorder %s20, 1
      %p43 = por %p41, %p42
      %p45 = scmp.ne.s32.totalorder %s28, %s44
      %p46 = scmp.eq.s32.totalorder %s20, 0
      %p47 = por %p45, %p46
      %s49 = sadd.s32 %s48, 1
      %p52 = scmp.eq.s32.totalorder %s14, 1
      %p53 = scmp.ne.s32.totalorder %s48, %s50
      %p54 = scmp.eq.s32.totalorder %s14, 0
      %p55 = por %p53, %p54
      %p56 = scmp.ne.s32.totalorder %s48, %s50
      %p57 = scmp.eq.s32.totalorder %s19, 1
      %p58 = por %p56, %p57
      %p59 = scmp.ne.s32.totalorder %s50, %s51
      %p60 = scmp.eq.s32.totalorder %s19, 0
      %p61 = por %p59, %p60
      %p62 = scmp.ne.s32.totalorder %s50, %s51
      %p63 = scmp.eq.s32.totalorder %s20, 1
      %p64 = por %p62, %p63
      %p66 = scmp.ne.s32.totalorder %s51, %s65
      %p67 = scmp.eq.s32.totalorder %s20, 0
      %p68 = por %p66, %p67
      %s70 = sadd.s32 %s69, 1
      %p73 = scmp.eq.s32.totalorder %s14, 1
      %p74 = scmp.ne.s32.totalorder %s69, %s71
      %p75 = scmp.eq.s32.totalorder %s14, 0
      %p76 = por %p74, %p75
      %p77 = scmp.ne.s32.totalorder %s69, %s71
      %p78 = scmp.eq.s32.totalorder %s19, 1
      %p79 = por %p77, %p78
      %p80 = scmp.ne.s32.totalorder %s71, %s72
      %p81 = scmp.eq.s32.totalorder %s19, 0
      %p82 = por %p80, %p81
      %p83 = scmp.ne.s32.totalorder %s71, %s72
      %p84 = scmp.eq.s32.totalorder %s20, 1
      %p85 = por %p83, %p84
      %p87 = scmp.ne.s32.totalorder %s72, %s86
      %p88 = scmp.eq.s32.totalorder %s20, 0
      %p89 = por %p87, %p88
      %s91 = sadd.s32 %s90, 1
      %p94 = scmp.eq.s32.totalorder %s14, 1
      %p95 = scmp.ne.s32.totalorder %s90, %s92
      %p96 = scmp.eq.s32.totalorder %s14, 0
      %p97 = por %p95, %p96
      %p98 = scmp.ne.s32.totalorder %s90, %s92
      %p99 = scmp.eq.s32.totalorder %s19, 1
      %p100 = por %p98, %p99
      %p101 = scmp.ne.s32.totalorder %s92, %s93
      %p102 = scmp.eq.s32.totalorder %s19, 0
      %p103 = por %p101, %p102
      %p104 = scmp.ne.s32.totalorder %s92, %s93
      %p105 = scmp.eq.s32.totalorder %s20, 1
      %p106 = por %p104, %p105
      %p108 = scmp.ne.s32.totalorder %s93, %s107
      %p109 = scmp.eq.s32.totalorder %s20, 0
      %p110 = por %p108, %p109
      %s112 = sadd.s32 %s111, 1
      %p115 = scmp.eq.s32.totalorder %s14, 1
      %p116 = scmp.ne.s32.totalorder %s111, %s113
      %p117 = scmp.eq.s32.totalorder %s14, 0
      %p118 = por %p116, %p117
      %p119 = scmp.ne.s32.totalorder %s111, %s113
      %p120 = scmp.eq.s32.totalorder %s19, 1
      %p121 = por %p119, %p120
      %p122 = scmp.ne.s32.totalorder %s113, %s114
      %p123 = scmp.eq.s32.totalorder %s19, 0
      %p124 = por %p122, %p123
      %p125 = scmp.ne.s32.totalorder %s113, %s114
      %p126 = scmp.eq.s32.totalorder %s20, 1
      %p127 = por %p125, %p126
      %p129 = scmp.ne.s32.totalorder %s114, %s128
      %p130 = scmp.eq.s32.totalorder %s20, 0
      %p131 = por %p129, %p130
      %s132 = ssub.s32 %s14, %s21
      %p133 = scmp.eq.s32.totalorder %s132, 0
      %s135 = sadd.s32 %s134, 1
      %s136 = scalar_select %p133, %s134, %s135
      %p139 = pneg %p133
      %p140 = scmp.eq.s32.totalorder %s14, 1
      %p141 = por %p139, %p140
      %p142 = scmp.ne.s32.totalorder %s134, %s137
      %p143 = scmp.eq.s32.totalorder %s14, 0
      %p144 = por %p142, %p143
      %p145 = scmp.ne.s32.totalorder %s134, %s137
      %p146 = scmp.eq.s32.totalorder %s19, 1
      %p147 = por %p145, %p146
      %p148 = scmp.ne.s32.totalorder %s137, %s138
      %p149 = scmp.eq.s32.totalorder %s19, 0
      %p150 = por %p148, %p149
      %p151 = scmp.ne.s32.totalorder %s137, %s138
      %p152 = scmp.eq.s32.totalorder %s20, 1
      %p153 = por %p151, %p152
      %p155 = scmp.ne.s32.totalorder %s138, %s154
      %p156 = scmp.eq.s32.totalorder %s20, 0
      %p157 = por %p155, %p156
      %p158 = scmp.le.s32.totalorder 1, %s14
      %p159 = scmp.lt.s32.totalorder %s14, 3
      %p160 = pnand %p158, %p159
      %p161 = pneg %p160
      // Predicated region
      $region9: #{tpu_custom_call.1} parent=5 // pred_check
        _
      $region10: #{tpu_custom_call.1} parent=5 // pred_check_branch
        %163 = sbr.rel (%p160) target = $region12
      $region11: #{tpu_custom_call.1} parent=5 // pred_region
        %s164 = ssub.s32 %s14, 1
        // Predicated region
        $region13: #{tpu_custom_call.1} parent=11 // pred_check
          %p165 = pneg %p61
        $region14: #{tpu_custom_call.1} parent=11 // pred_check_branch
          %167 = sbr.rel (%p165) target = $region16
        $region15: #{tpu_custom_call.1} parent=11 // pred_region
          _
        $region16: #{tpu_custom_call.1} parent=11 // pred_fallthru
          _
        // Predicated region
        $region17: #{tpu_custom_call.1} parent=11 // pred_check
          %p168 = pneg %p82
        $region18: #{tpu_custom_call.1} parent=11 // pred_check_branch
          %170 = sbr.rel (%p168) target = $region20
        $region19: #{tpu_custom_call.1} parent=11 // pred_region
          _
        $region20: #{tpu_custom_call.1} parent=11 // pred_fallthru
          _
        // Predicated region
        $region21: #{tpu_custom_call.1} parent=11 // pred_check
          %p171 = pneg %p103
        $region22: #{tpu_custom_call.1} parent=11 // pred_check_branch
          %173 = sbr.rel (%p171) target = $region24
        $region23: #{tpu_custom_call.1} parent=11 // pred_region
          _
        $region24: #{tpu_custom_call.1} parent=11 // pred_fallthru
          _
        // Predicated region
        $region25: #{tpu_custom_call.1} parent=11 // pred_check
          %p174 = pneg %p124
        $region26: #{tpu_custom_call.1} parent=11 // pred_check_branch
          %176 = sbr.rel (%p174) target = $region28
        $region27: #{tpu_custom_call.1} parent=11 // pred_region
          _
        $region28: #{tpu_custom_call.1} parent=11 // pred_fallthru
          _
      $region12: #{tpu_custom_call.1} parent=5 // pred_fallthru
        _
      %p177 = scmp.lt.s32.totalorder %s14, 2
      // Predicated region
      $region29: #{tpu_custom_call.1} parent=5 // pred_check
        %p178 = pneg %p177
      $region30: #{tpu_custom_call.1} parent=5 // pred_check_branch
        %180 = sbr.rel (%p178) target = $region32
      $region31: #{tpu_custom_call.1} parent=5 // pred_region
        // Predicated region
        $region33: #{tpu_custom_call.1} parent=31 // pred_check
          %p181 = pneg %p34
        $region34: #{tpu_custom_call.1} parent=31 // pred_check_branch
          %183 = sbr.rel (%p181) target = $region36
        $region35: #{tpu_custom_call.1} parent=31 // pred_region
          %p184 = scmp.lt.s32.totalorder %s14, 1
          %s185 = scalar_select %p184, %s14, 1
          %s186 = smul.addr %s185, 2
          %s187 = smul.addr %s186, 4
          %s188 = scalar_lea.vmem %s0, %s187
        $region36: #{tpu_custom_call.1} parent=31 // pred_fallthru
          _
      $region32: #{tpu_custom_call.1} parent=5 // pred_fallthru
        _
      %p189 = scmp.le.s32.totalorder 1, %s14
      %p190 = scmp.lt.s32.totalorder %s14, 3
      %p191 = pnand %p189, %p190
      %p192 = pneg %p191
      // Predicated region
      $region37: #{tpu_custom_call.1} parent=5 // pred_check
        _
      $region38: #{tpu_custom_call.1} parent=5 // pred_check_branch
        %194 = sbr.rel (%p191) target = $region40
      $region39: #{tpu_custom_call.1} parent=5 // pred_region
        %s195 = ssub.s32 %s14, 1
        %p196 = scmp.lt.s32.totalorder %s19, 1
        %s197 = scalar_select %p196, %s19, 1
        %s198 = smul.addr %s197, 2
        %s199 = smul.addr %s198, 4
        %s200 = scalar_lea.vmem %s0, %s199
        %p201 = pneg %p40
        %p202 = pneg %p37
        %p203 = pneg %p61
        %p204 = pneg %p58
        %p205 = pneg %p82
        %p206 = pneg %p79
        %p207 = pneg %p103
        %p208 = pneg %p100
        %p209 = pneg %p124
        %p210 = pneg %p121
        %p211 = pneg %p150
        %p212 = pneg %p147
        %s213 = sand.u32 %s137, 1
        %s214 = scalar_lea.sflag [#allocation4], %s213
        %s215 = sand.u32 %s137, 1
        %s216 = smul.addr %s215, 8
        %s217 = scalar_lea.vmem [#allocation3], %s216
        %p218 = scmp.lt.s32.totalorder %s19, 1
        %s219 = scalar_select %p218, %s19, 1
        %s220 = smul.addr %s219, 2
        %s221 = smul.addr %s220, 4
        %s222 = scalar_lea.vmem %s0, %s221
        %v223 = vlaneseq
        %v224 = vand.u32 %v223, 127
        %v225 = vadd.s32 %v224, 128
        %vm226 = vcmp.lt.s32.totalorder %v224, 0
        %v227 = vsub.s32 0, %v224
        %v228 = vsel %vm226, %v227, %v224
        %v229 = vshrl.u32 %v228, 4
        %v230 = vand.u32 %v228, 15
        %v231 = vsub.s32 0, %v230
        %v232 = vsel %vm226, %v231, %v230
        %vm233 = vcmp.lt.s32.totalorder %v225, 0
        %v234 = vsub.s32 0, %v225
        %v235 = vsel %vm233, %v234, %v225
        %v236 = vshrl.u32 %v235, 4
        %v237 = vand.u32 %v235, 15
        %v238 = vsub.s32 0, %v237
        %v239 = vsel %vm233, %v238, %v237
        %vm240 = vcmp.ne.s32.totalorder %v232, 0
        %vm241 = vcmp.ne.s32.totalorder %v239, 0
        %vm242 = vcmp.lt.s32.totalorder %v232, 0
        %vm243 = vcmp.lt.s32.totalorder %v239, 0
        %vm244 = vmand %vm242, %vm240
        %vm245 = vmand %vm243, %vm241
        %v246 = vadd.s32 %v232, 16
        %v247 = vadd.s32 %v239, 16
        %v248 = vsel %vm244, %v246, %v232
        %v249 = vsel %vm245, %v247, %v239
        %vm250 = vcmp.ne.s32.totalorder %v248, 0
        %vm251 = vcmp.ne.s32.totalorder %v249, 0
        %vm252 = vcmp.ne.s32.totalorder %v248, 15
        %vm253 = vcmp.ne.s32.totalorder %v249, 15
        %254 = vst [vmem:[#allocation2] sm:$0xf] 0.0
        %255 = vst [vmem:[#allocation2 + $0xc] sm:$0xf] 0.0
        %v256 = vld [vmem:[%s222] sm:$0xff]
        %257 = vst [vmem:[#allocation2 + $0x4] sm:$0xff] %v256
        %v258 = vld [vmem:[#allocation2] sm:$0xff]
        %v259 = vld [vmem:[#allocation2 + $0x8] sm:$0xf]
        %v262 = vcombine.high %v258, %v258
        %263 = vrot.lane.b32.xlu0 %v258, 17
        %v264 = vpop.permute.xlu0 %263
        %265 = vrot.lane.b32.xlu0 %v262, 17
        %v266 = vpop.permute.xlu0 %265
        %267 = vrot.lane.b32.xlu0 %v259, 17
        %v268 = vpop.permute.xlu0 %267
        %vm269 = vcmask 138240
        %v270 = vsel %vm269, %v264, %v266
        %v271 = vsel %vm269, %v266, %v268
        %v274 = vsel %vm250, %v270, 0.0
        %v275 = vsel %vm251, %v271, 0.0
        %v276 = vld [vmem:[%s1] sm:$0xf]
        %s277 = scalar_lea.vmem %s1, 4
        %v278 = vld [vmem:[%s277] sm:$0xf]
        %279 = vrot.lane.b32.xlu0 %v258, 16
        %v280 = vpop.permute.xlu0 %279
        %281 = vrot.lane.b32.xlu0 %v262, 16
        %v282 = vpop.permute.xlu0 %281
        %283 = vrot.lane.b32.xlu0 %v259, 16
        %v284 = vpop.permute.xlu0 %283
        %vm285 = vcmask 130048
        %v286 = vsel %vm285, %v280, %v282
        %v287 = vsel %vm285, %v282, %v284
        %vm288 = vcmask 31744
        %v290 = vsel %vm288, %v278, 0
        %vm292 = vcmask 1043456
        %v293 = vsel %vm292, %v286, 0
        %v295 = vsel %vm292, %v287, 0
        %297 = vmatprep.subr.mxu0 %v295
        %298 = vmatpush1.msra.mxu0 %v293
        %299 = vmatprep.subr.mxu0 0.0
        %300 = vmatpush1.msra.mxu0 0.0
        %301 = vmatprep.subr.mxu0 0.0
        %302 = vmatpush1.msra.mxu0 0.0
        %303 = vmatprep.subr.mxu0 0.0
        %304 = vmatpush1.msra.mxu0 0.0
        %305 = vmatprep.subr.mxu0 0.0
        %306 = vmatpush1.msra.mxu0 0.0
        %307 = vmatprep.subr.mxu0 0.0
        %308 = vmatpush1.msra.mxu0 0.0
        %309 = vmatprep.subr.mxu0 0.0
        %310 = vmatpush1.msra.mxu0 0.0
        %311 = vmatprep.subr.mxu0 0.0
        %312 = vmatpush1.msra.mxu0 0.0
        %313 = vmatprep.subr.mxu0 0.0
        %314 = vmatpush1.msra.mxu0 0.0
        %315 = vmatprep.subr.mxu0 0.0
        %316 = vmatpush1.msra.mxu0 0.0
        %317 = vmatprep.subr.mxu0 0.0
        %318 = vmatpush1.msra.mxu0 0.0
        %319 = vmatprep.subr.mxu0 0.0
        %320 = vmatpush1.msra.mxu0 0.0
        %321 = vmatprep.subr.mxu0 0.0
        %322 = vmatpush1.msra.mxu0 0.0
        %323 = vmatprep.subr.mxu0 0.0
        %324 = vmatpush1.msra.mxu0 0.0
        %325 = vmatprep.subr.mxu0 0.0
        %326 = vmatpush1.msra.mxu0 0.0
        %327 = vmatprep.subr.mxu0 0.0
        %328 = vmatpush1.msra.mxu0 0.0
        %329 = vmatprep.subr.mxu0 0.0
        %330 = vmatpush1.msra.mxu0 0.0
        %331 = vmatprep.subr.mxu0 0.0
        %332 = vmatpush1.msra.mxu0 0.0
        %333 = vmatprep.subr.mxu0 0.0
        %334 = vmatpush1.msra.mxu0 0.0
        %335 = vmatprep.subr.mxu0 0.0
        %336 = vmatpush1.msra.mxu0 0.0
        %337 = vmatprep.subr.mxu0 0.0
        %338 = vmatpush1.msra.mxu0 0.0
        %339 = vmatprep.subr.mxu0 0.0
        %340 = vmatpush1.msra.mxu0 0.0
        %341 = vmatprep.subr.mxu0 0.0
        %342 = vmatpush1.msra.mxu0 0.0
        %343 = vmatprep.subr.mxu0 0.0
        %344 = vmatpush1.msra.mxu0 0.0
        %345 = vmatprep.subr.mxu0 0.0
        %346 = vmatpush1.msra.mxu0 0.0
        %347 = vmatprep.subr.mxu0 0.0
        %348 = vmatpush1.msra.mxu0 0.0
        %349 = vmatprep.subr.mxu0 0.0
        %350 = vmatpush1.msra.mxu0 0.0
        %351 = vmatprep.subr.mxu0 0.0
        %352 = vmatpush1.msra.mxu0 0.0
        %353 = vmatprep.subr.mxu0 0.0
        %354 = vmatpush1.msra.mxu0 0.0
        %355 = vmatprep.subr.mxu0 0.0
        %356 = vmatpush1.msra.mxu0 0.0
        %357 = vmatprep.subr.mxu0 0.0
        %358 = vmatpush1.msra.mxu0 0.0
        %359 = vmatprep.subr.mxu0 0.0
        %360 = vmatpush1.msra.mxu0 0.0
        %361 = vmatprep.mubr.f32.mxu0 0.0
        %362 = vmatmul.mubr.f32.gmra.mrb[0].mxu0 %v290
        %v363 = vpop.f32.mrb[0].mxu0
        %v364 = vadd.f32 0.0, %v363
        %v365 = vpop.f32.mrb[0].mxu0
        %v366 = vadd.f32 0.0, %v365
        %367 = vdwg.mxu0
        %v369 = vsel %vm288, %v276, 0
        %v372 = vsel %vm292, %v274, 0
        %v375 = vsel %vm292, %v275, 0
        %377 = vmatprep.subr.mxu0 %v375
        %378 = vmatpush1.msra.mxu0 %v372
        %379 = vmatprep.subr.mxu0 0.0
        %380 = vmatpush1.msra.mxu0 0.0
        %381 = vmatprep.subr.mxu0 0.0
        %382 = vmatpush1.msra.mxu0 0.0
        %383 = vmatprep.subr.mxu0 0.0
        %384 = vmatpush1.msra.mxu0 0.0
        %385 = vmatprep.subr.mxu0 0.0
        %386 = vmatpush1.msra.mxu0 0.0
        %387 = vmatprep.subr.mxu0 0.0
        %388 = vmatpush1.msra.mxu0 0.0
        %389 = vmatprep.subr.mxu0 0.0
        %390 = vmatpush1.msra.mxu0 0.0
        %391 = vmatprep.subr.mxu0 0.0
        %392 = vmatpush1.msra.mxu0 0.0
        %393 = vmatprep.subr.mxu0 0.0
        %394 = vmatpush1.msra.mxu0 0.0
        %395 = vmatprep.subr.mxu0 0.0
        %396 = vmatpush1.msra.mxu0 0.0
        %397 = vmatprep.subr.mxu0 0.0
        %398 = vmatpush1.msra.mxu0 0.0
        %399 = vmatprep.subr.mxu0 0.0
        %400 = vmatpush1.msra.mxu0 0.0
        %401 = vmatprep.subr.mxu0 0.0
        %402 = vmatpush1.msra.mxu0 0.0
        %403 = vmatprep.subr.mxu0 0.0
        %404 = vmatpush1.msra.mxu0 0.0
        %405 = vmatprep.subr.mxu0 0.0
        %406 = vmatpush1.msra.mxu0 0.0
        %407 = vmatprep.subr.mxu0 0.0
        %408 = vmatpush1.msra.mxu0 0.0
        %409 = vmatprep.subr.mxu0 0.0
        %410 = vmatpush1.msra.mxu0 0.0
        %411 = vmatprep.subr.mxu0 0.0
        %412 = vmatpush1.msra.mxu0 0.0
        %413 = vmatprep.subr.mxu0 0.0
        %414 = vmatpush1.msra.mxu0 0.0
        %415 = vmatprep.subr.mxu0 0.0
        %416 = vmatpush1.msra.mxu0 0.0
        %417 = vmatprep.subr.mxu0 0.0
        %418 = vmatpush1.msra.mxu0 0.0
        %419 = vmatprep.subr.mxu0 0.0
        %420 = vmatpush1.msra.mxu0 0.0
        %421 = vmatprep.subr.mxu0 0.0
        %422 = vmatpush1.msra.mxu0 0.0
        %423 = vmatprep.subr.mxu0 0.0
        %424 = vmatpush1.msra.mxu0 0.0
        %425 = vmatprep.subr.mxu0 0.0
        %426 = vmatpush1.msra.mxu0 0.0
        %427 = vmatprep.subr.mxu0 0.0
        %428 = vmatpush1.msra.mxu0 0.0
        %429 = vmatprep.subr.mxu0 0.0
        %430 = vmatpush1.msra.mxu0 0.0
        %431 = vmatprep.subr.mxu0 0.0
        %432 = vmatpush1.msra.mxu0 0.0
        %433 = vmatprep.subr.mxu0 0.0
        %434 = vmatpush1.msra.mxu0 0.0
        %435 = vmatprep.subr.mxu0 0.0
        %436 = vmatpush1.msra.mxu0 0.0
        %437 = vmatprep.subr.mxu0 0.0
        %438 = vmatpush1.msra.mxu0 0.0
        %439 = vmatprep.subr.mxu0 0.0
        %440 = vmatpush1.msra.mxu0 0.0
        %441 = vmatprep.mubr.f32.mxu0 0.0
        %442 = vmatmul.mubr.f32.gmra.mrb[0].mxu0 %v369
        %v443 = vpop.f32.mrb[0].mxu0
        %v444 = vadd.f32 %v364, %v443
        %v445 = vpop.f32.mrb[0].mxu0
        %v446 = vadd.f32 %v366, %v445
        %447 = vdwg.mxu0
        %v448 = vld [vmem:[#allocation2] sm:$0xff]
        %v449 = vld [vmem:[#allocation2 + $0x8] sm:$0xf]
        %v452 = vcombine.high %v448, %v448
        %453 = vrot.lane.b32.xlu0 %v448, 15
        %v454 = vpop.permute.xlu0 %453
        %455 = vrot.lane.b32.xlu0 %v452, 15
        %v456 = vpop.permute.xlu0 %455
        %457 = vrot.lane.b32.xlu0 %v449, 15
        %v458 = vpop.permute.xlu0 %457
        %vm459 = vcmask 121856
        %v460 = vsel %vm459, %v454, %v456
        %v461 = vsel %vm459, %v456, %v458
        %v464 = vsel %vm252, %v460, 0.0
        %v465 = vsel %vm253, %v461, 0.0
        %s466 = scalar_lea.vmem %s1, 8
        %v467 = vld [vmem:[%s466] sm:$0xf]
        %v469 = vsel %vm288, %v467, 0
        %v472 = vsel %vm292, %v464, 0
        %v475 = vsel %vm292, %v465, 0
        %477 = vmatprep.subr.mxu0 %v475
        %478 = vmatpush1.msra.mxu0 %v472
        %479 = vmatprep.subr.mxu0 0.0
        %480 = vmatpush1.msra.mxu0 0.0
        %481 = vmatprep.subr.mxu0 0.0
        %482 = vmatpush1.msra.mxu0 0.0
        %483 = vmatprep.subr.mxu0 0.0
        %484 = vmatpush1.msra.mxu0 0.0
        %485 = vmatprep.subr.mxu0 0.0
        %486 = vmatpush1.msra.mxu0 0.0
        %487 = vmatprep.subr.mxu0 0.0
        %488 = vmatpush1.msra.mxu0 0.0
        %489 = vmatprep.subr.mxu0 0.0
        %490 = vmatpush1.msra.mxu0 0.0
        %491 = vmatprep.subr.mxu0 0.0
        %492 = vmatpush1.msra.mxu0 0.0
        %493 = vmatprep.subr.mxu0 0.0
        %494 = vmatpush1.msra.mxu0 0.0
        %495 = vmatprep.subr.mxu0 0.0
        %496 = vmatpush1.msra.mxu0 0.0
        %497 = vmatprep.subr.mxu0 0.0
        %498 = vmatpush1.msra.mxu0 0.0
        %499 = vmatprep.subr.mxu0 0.0
        %500 = vmatpush1.msra.mxu0 0.0
        %501 = vmatprep.subr.mxu0 0.0
        %502 = vmatpush1.msra.mxu0 0.0
        %503 = vmatprep.subr.mxu0 0.0
        %504 = vmatpush1.msra.mxu0 0.0
        %505 = vmatprep.subr.mxu0 0.0
        %506 = vmatpush1.msra.mxu0 0.0
        %507 = vmatprep.subr.mxu0 0.0
        %508 = vmatpush1.msra.mxu0 0.0
        %509 = vmatprep.subr.mxu0 0.0
        %510 = vmatpush1.msra.mxu0 0.0
        %511 = vmatprep.subr.mxu0 0.0
        %512 = vmatpush1.msra.mxu0 0.0
        %513 = vmatprep.subr.mxu0 0.0
        %514 = vmatpush1.msra.mxu0 0.0
        %515 = vmatprep.subr.mxu0 0.0
        %516 = vmatpush1.msra.mxu0 0.0
        %517 = vmatprep.subr.mxu0 0.0
        %518 = vmatpush1.msra.mxu0 0.0
        %519 = vmatprep.subr.mxu0 0.0
        %520 = vmatpush1.msra.mxu0 0.0
        %521 = vmatprep.subr.mxu0 0.0
        %522 = vmatpush1.msra.mxu0 0.0
        %523 = vmatprep.subr.mxu0 0.0
        %524 = vmatpush1.msra.mxu0 0.0
        %525 = vmatprep.subr.mxu0 0.0
        %526 = vmatpush1.msra.mxu0 0.0
        %527 = vmatprep.subr.mxu0 0.0
        %528 = vmatpush1.msra.mxu0 0.0
        %529 = vmatprep.subr.mxu0 0.0
        %530 = vmatpush1.msra.mxu0 0.0
        %531 = vmatprep.subr.mxu0 0.0
        %532 = vmatpush1.msra.mxu0 0.0
        %533 = vmatprep.subr.mxu0 0.0
        %534 = vmatpush1.msra.mxu0 0.0
        %535 = vmatprep.subr.mxu0 0.0
        %536 = vmatpush1.msra.mxu0 0.0
        %537 = vmatprep.subr.mxu0 0.0
        %538 = vmatpush1.msra.mxu0 0.0
        %539 = vmatprep.subr.mxu0 0.0
        %540 = vmatpush1.msra.mxu0 0.0
        %541 = vmatprep.mubr.f32.mxu0 0.0
        %542 = vmatmul.mubr.f32.gmra.mrb[0].mxu0 %v469
        %v543 = vpop.f32.mrb[0].mxu0
        %v544 = vadd.f32 0.0, %v543
        %v545 = vpop.f32.mrb[0].mxu0
        %v546 = vadd.f32 0.0, %v545
        %547 = vdwg.mxu0
        %v548 = vadd.f32 %v444, %v544
        %v549 = vadd.f32 %v446, %v546
        %v550 = vld [vmem:[#allocation2] sm:$0xff]
        %v551 = vld [vmem:[#allocation2 + $0x8] sm:$0xf]
        %v554 = vcombine.high %v550, %v550
        %555 = vrot.lane.b32.xlu0 %v550, 1
        %v556 = vpop.permute.xlu0 %555
        %557 = vrot.lane.b32.xlu0 %v554, 1
        %v558 = vpop.permute.xlu0 %557
        %559 = vrot.lane.b32.xlu0 %v551, 1
        %v560 = vpop.permute.xlu0 %559
        %vm561 = vcmask 7168
        %v562 = vsel %vm561, %v556, %v558
        %v563 = vsel %vm561, %v558, %v560
        %v566 = vsel %vm250, %v562, 0.0
        %v567 = vsel %vm251, %v563, 0.0
        %s568 = scalar_lea.vmem %s1, 12
        %v569 = vld [vmem:[%s568] sm:$0xf]
        %v571 = vsel %vm288, %v569, 0
        %v574 = vsel %vm292, %v566, 0
        %v577 = vsel %vm292, %v567, 0
        %579 = vmatprep.subr.mxu0 %v577
        %580 = vmatpush1.msra.mxu0 %v574
        %581 = vmatprep.subr.mxu0 0.0
        %582 = vmatpush1.msra.mxu0 0.0
        %583 = vmatprep.subr.mxu0 0.0
        %584 = vmatpush1.msra.mxu0 0.0
        %585 = vmatprep.subr.mxu0 0.0
        %586 = vmatpush1.msra.mxu0 0.0
        %587 = vmatprep.subr.mxu0 0.0
        %588 = vmatpush1.msra.mxu0 0.0
        %589 = vmatprep.subr.mxu0 0.0
        %590 = vmatpush1.msra.mxu0 0.0
        %591 = vmatprep.subr.mxu0 0.0
        %592 = vmatpush1.msra.mxu0 0.0
        %593 = vmatprep.subr.mxu0 0.0
        %594 = vmatpush1.msra.mxu0 0.0
        %595 = vmatprep.subr.mxu0 0.0
        %596 = vmatpush1.msra.mxu0 0.0
        %597 = vmatprep.subr.mxu0 0.0
        %598 = vmatpush1.msra.mxu0 0.0
        %599 = vmatprep.subr.mxu0 0.0
        %600 = vmatpush1.msra.mxu0 0.0
        %601 = vmatprep.subr.mxu0 0.0
        %602 = vmatpush1.msra.mxu0 0.0
        %603 = vmatprep.subr.mxu0 0.0
        %604 = vmatpush1.msra.mxu0 0.0
        %605 = vmatprep.subr.mxu0 0.0
        %606 = vmatpush1.msra.mxu0 0.0
        %607 = vmatprep.subr.mxu0 0.0
        %608 = vmatpush1.msra.mxu0 0.0
        %609 = vmatprep.subr.mxu0 0.0
        %610 = vmatpush1.msra.mxu0 0.0
        %611 = vmatprep.subr.mxu0 0.0
        %612 = vmatpush1.msra.mxu0 0.0
        %613 = vmatprep.subr.mxu0 0.0
        %614 = vmatpush1.msra.mxu0 0.0
        %615 = vmatprep.subr.mxu0 0.0
        %616 = vmatpush1.msra.mxu0 0.0
        %617 = vmatprep.subr.mxu0 0.0
        %618 = vmatpush1.msra.mxu0 0.0
        %619 = vmatprep.subr.mxu0 0.0
        %620 = vmatpush1.msra.mxu0 0.0
        %621 = vmatprep.subr.mxu0 0.0
        %622 = vmatpush1.msra.mxu0 0.0
        %623 = vmatprep.subr.mxu0 0.0
        %624 = vmatpush1.msra.mxu0 0.0
        %625 = vmatprep.subr.mxu0 0.0
        %626 = vmatpush1.msra.mxu0 0.0
        %627 = vmatprep.subr.mxu0 0.0
        %628 = vmatpush1.msra.mxu0 0.0
        %629 = vmatprep.subr.mxu0 0.0
        %630 = vmatpush1.msra.mxu0 0.0
        %631 = vmatprep.subr.mxu0 0.0
        %632 = vmatpush1.msra.mxu0 0.0
        %633 = vmatprep.subr.mxu0 0.0
        %634 = vmatpush1.msra.mxu0 0.0
        %635 = vmatprep.subr.mxu0 0.0
        %636 = vmatpush1.msra.mxu0 0.0
        %637 = vmatprep.subr.mxu0 0.0
        %638 = vmatpush1.msra.mxu0 0.0
        %639 = vmatprep.subr.mxu0 0.0
        %640 = vmatpush1.msra.mxu0 0.0
        %641 = vmatprep.subr.mxu0 0.0
        %642 = vmatpush1.msra.mxu0 0.0
        %643 = vmatprep.mubr.f32.mxu0 0.0
        %644 = vmatmul.mubr.f32.gmra.mrb[0].mxu0 %v571
        %v645 = vpop.f32.mrb[0].mxu0
        %v646 = vadd.f32 0.0, %v645
        %v647 = vpop.f32.mrb[0].mxu0
        %v648 = vadd.f32 0.0, %v647
        %649 = vdwg.mxu0
        %v650 = vadd.f32 %v548, %v646
        %v651 = vadd.f32 %v549, %v648
        %v652 = vld [vmem:[#allocation2 + $0x4] sm:$0xff]
        %s653 = scalar_lea.vmem %s1, 16
        %v654 = vld [vmem:[%s653] sm:$0xf]
        %v656 = vcombine.high %v652, %v652
        %v658 = vsel %vm288, %v654, 0
        %v660 = vsel %vm292, %v652, 0
        %v662 = vsel %vm292, %v656, 0
        %664 = vmatprep.subr.mxu0 %v662
        %665 = vmatpush1.msra.mxu0 %v660
        %666 = vmatprep.subr.mxu0 0.0
        %667 = vmatpush1.msra.mxu0 0.0
        %668 = vmatprep.subr.mxu0 0.0
        %669 = vmatpush1.msra.mxu0 0.0
        %670 = vmatprep.subr.mxu0 0.0
        %671 = vmatpush1.msra.mxu0 0.0
        %672 = vmatprep.subr.mxu0 0.0
        %673 = vmatpush1.msra.mxu0 0.0
        %674 = vmatprep.subr.mxu0 0.0
        %675 = vmatpush1.msra.mxu0 0.0
        %676 = vmatprep.subr.mxu0 0.0
        %677 = vmatpush1.msra.mxu0 0.0
        %678 = vmatprep.subr.mxu0 0.0
        %679 = vmatpush1.msra.mxu0 0.0
        %680 = vmatprep.subr.mxu0 0.0
        %681 = vmatpush1.msra.mxu0 0.0
        %682 = vmatprep.subr.mxu0 0.0
        %683 = vmatpush1.msra.mxu0 0.0
        %684 = vmatprep.subr.mxu0 0.0
        %685 = vmatpush1.msra.mxu0 0.0
        %686 = vmatprep.subr.mxu0 0.0
        %687 = vmatpush1.msra.mxu0 0.0
        %688 = vmatprep.subr.mxu0 0.0
        %689 = vmatpush1.msra.mxu0 0.0
        %690 = vmatprep.subr.mxu0 0.0
        %691 = vmatpush1.msra.mxu0 0.0
        %692 = vmatprep.subr.mxu0 0.0
        %693 = vmatpush1.msra.mxu0 0.0
        %694 = vmatprep.subr.mxu0 0.0
        %695 = vmatpush1.msra.mxu0 0.0
        %696 = vmatprep.subr.mxu0 0.0
        %697 = vmatpush1.msra.mxu0 0.0
        %698 = vmatprep.subr.mxu0 0.0
        %699 = vmatpush1.msra.mxu0 0.0
        %700 = vmatprep.subr.mxu0 0.0
        %701 = vmatpush1.msra.mxu0 0.0
        %702 = vmatprep.subr.mxu0 0.0
        %703 = vmatpush1.msra.mxu0 0.0
        %704 = vmatprep.subr.mxu0 0.0
        %705 = vmatpush1.msra.mxu0 0.0
        %706 = vmatprep.subr.mxu0 0.0
        %707 = vmatpush1.msra.mxu0 0.0
        %708 = vmatprep.subr.mxu0 0.0
        %709 = vmatpush1.msra.mxu0 0.0
        %710 = vmatprep.subr.mxu0 0.0
        %711 = vmatpush1.msra.mxu0 0.0
        %712 = vmatprep.subr.mxu0 0.0
        %713 = vmatpush1.msra.mxu0 0.0
        %714 = vmatprep.subr.mxu0 0.0
        %715 = vmatpush1.msra.mxu0 0.0
        %716 = vmatprep.subr.mxu0 0.0
        %717 = vmatpush1.msra.mxu0 0.0
        %718 = vmatprep.subr.mxu0 0.0
        %719 = vmatpush1.msra.mxu0 0.0
        %720 = vmatprep.subr.mxu0 0.0
        %721 = vmatpush1.msra.mxu0 0.0
        %722 = vmatprep.subr.mxu0 0.0
        %723 = vmatpush1.msra.mxu0 0.0
        %724 = vmatprep.subr.mxu0 0.0
        %725 = vmatpush1.msra.mxu0 0.0
        %726 = vmatprep.subr.mxu0 0.0
        %727 = vmatpush1.msra.mxu0 0.0
        %728 = vmatprep.mubr.f32.mxu0 0.0
        %729 = vmatmul.mubr.f32.gmra.mrb[0].mxu0 %v658
        %v730 = vpop.f32.mrb[0].mxu0
        %v731 = vadd.f32 0.0, %v730
        %v732 = vpop.f32.mrb[0].mxu0
        %v733 = vadd.f32 0.0, %v732
        %734 = vdwg.mxu0
        %v735 = vadd.f32 %v650, %v731
        %v736 = vadd.f32 %v651, %v733
        %v737 = vld [vmem:[#allocation2 + $0x4] sm:$0xff]
        %v738 = vld [vmem:[#allocation2 + $0xc] sm:$0xf]
        %v741 = vcombine.high %v737, %v737
        %742 = vrot.lane.b32.xlu0 %v737, 127
        %v743 = vpop.permute.xlu0 %742
        %744 = vrot.lane.b32.xlu0 %v741, 127
        %v745 = vpop.permute.xlu0 %744
        %746 = vrot.lane.b32.xlu0 %v738, 127
        %v747 = vpop.permute.xlu0 %746
        %vm748 = vcmask 1039360
        %v749 = vsel %vm748, %v743, %v745
        %v750 = vsel %vm748, %v745, %v747
        %v753 = vsel %vm252, %v749, 0.0
        %v754 = vsel %vm253, %v750, 0.0
        %s755 = scalar_lea.vmem %s1, 20
        %v756 = vld [vmem:[%s755] sm:$0xf]
        %v758 = vsel %vm288, %v756, 0
        %v761 = vsel %vm292, %v753, 0
        %v764 = vsel %vm292, %v754, 0
        %766 = vmatprep.subr.mxu0 %v764
        %767 = vmatpush1.msra.mxu0 %v761
        %768 = vmatprep.subr.mxu0 0.0
        %769 = vmatpush1.msra.mxu0 0.0
        %770 = vmatprep.subr.mxu0 0.0
        %771 = vmatpush1.msra.mxu0 0.0
        %772 = vmatprep.subr.mxu0 0.0
        %773 = vmatpush1.msra.mxu0 0.0
        %774 = vmatprep.subr.mxu0 0.0
        %775 = vmatpush1.msra.mxu0 0.0
        %776 = vmatprep.subr.mxu0 0.0
        %777 = vmatpush1.msra.mxu0 0.0
        %778 = vmatprep.subr.mxu0 0.0
        %779 = vmatpush1.msra.mxu0 0.0
        %780 = vmatprep.subr.mxu0 0.0
        %781 = vmatpush1.msra.mxu0 0.0
        %782 = vmatprep.subr.mxu0 0.0
        %783 = vmatpush1.msra.mxu0 0.0
        %784 = vmatprep.subr.mxu0 0.0
        %785 = vmatpush1.msra.mxu0 0.0
        %786 = vmatprep.subr.mxu0 0.0
        %787 = vmatpush1.msra.mxu0 0.0
        %788 = vmatprep.subr.mxu0 0.0
        %789 = vmatpush1.msra.mxu0 0.0
        %790 = vmatprep.subr.mxu0 0.0
        %791 = vmatpush1.msra.mxu0 0.0
        %792 = vmatprep.subr.mxu0 0.0
        %793 = vmatpush1.msra.mxu0 0.0
        %794 = vmatprep.subr.mxu0 0.0
        %795 = vmatpush1.msra.mxu0 0.0
        %796 = vmatprep.subr.mxu0 0.0
        %797 = vmatpush1.msra.mxu0 0.0
        %798 = vmatprep.subr.mxu0 0.0
        %799 = vmatpush1.msra.mxu0 0.0
        %800 = vmatprep.subr.mxu0 0.0
        %801 = vmatpush1.msra.mxu0 0.0
        %802 = vmatprep.subr.mxu0 0.0
        %803 = vmatpush1.msra.mxu0 0.0
        %804 = vmatprep.subr.mxu0 0.0
        %805 = vmatpush1.msra.mxu0 0.0
        %806 = vmatprep.subr.mxu0 0.0
        %807 = vmatpush1.msra.mxu0 0.0
        %808 = vmatprep.subr.mxu0 0.0
        %809 = vmatpush1.msra.mxu0 0.0
        %810 = vmatprep.subr.mxu0 0.0
        %811 = vmatpush1.msra.mxu0 0.0
        %812 = vmatprep.subr.mxu0 0.0
        %813 = vmatpush1.msra.mxu0 0.0
        %814 = vmatprep.subr.mxu0 0.0
        %815 = vmatpush1.msra.mxu0 0.0
        %816 = vmatprep.subr.mxu0 0.0
        %817 = vmatpush1.msra.mxu0 0.0
        %818 = vmatprep.subr.mxu0 0.0
        %819 = vmatpush1.msra.mxu0 0.0
        %820 = vmatprep.subr.mxu0 0.0
        %821 = vmatpush1.msra.mxu0 0.0
        %822 = vmatprep.subr.mxu0 0.0
        %823 = vmatpush1.msra.mxu0 0.0
        %824 = vmatprep.subr.mxu0 0.0
        %825 = vmatpush1.msra.mxu0 0.0
        %826 = vmatprep.subr.mxu0 0.0
        %827 = vmatpush1.msra.mxu0 0.0
        %828 = vmatprep.subr.mxu0 0.0
        %829 = vmatpush1.msra.mxu0 0.0
        %830 = vmatprep.mubr.f32.mxu0 0.0
        %831 = vmatmul.mubr.f32.gmra.mrb[0].mxu0 %v758
        %v832 = vpop.f32.mrb[0].mxu0
        %v833 = vadd.f32 0.0, %v832
        %v834 = vpop.f32.mrb[0].mxu0
        %v835 = vadd.f32 0.0, %v834
        %836 = vdwg.mxu0
        %v837 = vadd.f32 %v735, %v833
        %v838 = vadd.f32 %v736, %v835
        %v839 = vld [vmem:[#allocation2 + $0x4] sm:$0xff]
        %v840 = vld [vmem:[#allocation2 + $0xc] sm:$0xf]
        %v843 = vcombine.high %v839, %v839
        %844 = vrot.lane.b32.xlu0 %v839, 113
        %v845 = vpop.permute.xlu0 %844
        %846 = vrot.lane.b32.xlu0 %v843, 113
        %v847 = vpop.permute.xlu0 %846
        %848 = vrot.lane.b32.xlu0 %v840, 113
        %v849 = vpop.permute.xlu0 %848
        %vm850 = vcmask 924672
        %v851 = vsel %vm850, %v845, %v847
        %v852 = vsel %vm850, %v847, %v849
        %v855 = vsel %vm250, %v851, 0.0
        %v856 = vsel %vm251, %v852, 0.0
        %s857 = scalar_lea.vmem %s1, 24
        %v858 = vld [vmem:[%s857] sm:$0xf]
        %v860 = vsel %vm288, %v858, 0
        %v863 = vsel %vm292, %v855, 0
        %v866 = vsel %vm292, %v856, 0
        %868 = vmatprep.subr.mxu0 %v866
        %869 = vmatpush1.msra.mxu0 %v863
        %870 = vmatprep.subr.mxu0 0.0
        %871 = vmatpush1.msra.mxu0 0.0
        %872 = vmatprep.subr.mxu0 0.0
        %873 = vmatpush1.msra.mxu0 0.0
        %874 = vmatprep.subr.mxu0 0.0
        %875 = vmatpush1.msra.mxu0 0.0
        %876 = vmatprep.subr.mxu0 0.0
        %877 = vmatpush1.msra.mxu0 0.0
        %878 = vmatprep.subr.mxu0 0.0
        %879 = vmatpush1.msra.mxu0 0.0
        %880 = vmatprep.subr.mxu0 0.0
        %881 = vmatpush1.msra.mxu0 0.0
        %882 = vmatprep.subr.mxu0 0.0
        %883 = vmatpush1.msra.mxu0 0.0
        %884 = vmatprep.subr.mxu0 0.0
        %885 = vmatpush1.msra.mxu0 0.0
        %886 = vmatprep.subr.mxu0 0.0
        %887 = vmatpush1.msra.mxu0 0.0
        %888 = vmatprep.subr.mxu0 0.0
        %889 = vmatpush1.msra.mxu0 0.0
        %890 = vmatprep.subr.mxu0 0.0
        %891 = vmatpush1.msra.mxu0 0.0
        %892 = vmatprep.subr.mxu0 0.0
        %893 = vmatpush1.msra.mxu0 0.0
        %894 = vmatprep.subr.mxu0 0.0
        %895 = vmatpush1.msra.mxu0 0.0
        %896 = vmatprep.subr.mxu0 0.0
        %897 = vmatpush1.msra.mxu0 0.0
        %898 = vmatprep.subr.mxu0 0.0
        %899 = vmatpush1.msra.mxu0 0.0
        %900 = vmatprep.subr.mxu0 0.0
        %901 = vmatpush1.msra.mxu0 0.0
        %902 = vmatprep.subr.mxu0 0.0
        %903 = vmatpush1.msra.mxu0 0.0
        %904 = vmatprep.subr.mxu0 0.0
        %905 = vmatpush1.msra.mxu0 0.0
        %906 = vmatprep.subr.mxu0 0.0
        %907 = vmatpush1.msra.mxu0 0.0
        %908 = vmatprep.subr.mxu0 0.0
        %909 = vmatpush1.msra.mxu0 0.0
        %910 = vmatprep.subr.mxu0 0.0
        %911 = vmatpush1.msra.mxu0 0.0
        %912 = vmatprep.subr.mxu0 0.0
        %913 = vmatpush1.msra.mxu0 0.0
        %914 = vmatprep.subr.mxu0 0.0
        %915 = vmatpush1.msra.mxu0 0.0
        %916 = vmatprep.subr.mxu0 0.0
        %917 = vmatpush1.msra.mxu0 0.0
        %918 = vmatprep.subr.mxu0 0.0
        %919 = vmatpush1.msra.mxu0 0.0
        %920 = vmatprep.subr.mxu0 0.0
        %921 = vmatpush1.msra.mxu0 0.0
        %922 = vmatprep.subr.mxu0 0.0
        %923 = vmatpush1.msra.mxu0 0.0
        %924 = vmatprep.subr.mxu0 0.0
        %925 = vmatpush1.msra.mxu0 0.0
        %926 = vmatprep.subr.mxu0 0.0
        %927 = vmatpush1.msra.mxu0 0.0
        %928 = vmatprep.subr.mxu0 0.0
        %929 = vmatpush1.msra.mxu0 0.0
        %930 = vmatprep.subr.mxu0 0.0
        %931 = vmatpush1.msra.mxu0 0.0
        %932 = vmatprep.mubr.f32.mxu0 0.0
        %933 = vmatmul.mubr.f32.gmra.mrb[0].mxu0 %v860
        %v934 = vpop.f32.mrb[0].mxu0
        %v935 = vadd.f32 0.0, %v934
        %v936 = vpop.f32.mrb[0].mxu0
        %v937 = vadd.f32 0.0, %v936
        %938 = vdwg.mxu0
        %v939 = vadd.f32 %v837, %v935
        %v940 = vadd.f32 %v838, %v937
        %v941 = vld [vmem:[#allocation2 + $0x4] sm:$0xff]
        %v942 = vld [vmem:[#allocation2 + $0xc] sm:$0xf]
        %s943 = scalar_lea.vmem %s1, 28
        %v944 = vld [vmem:[%s943] sm:$0xf]
        %v947 = vcombine.high %v941, %v941
        %948 = vrot.lane.b32.xlu0 %v941, 112
        %v949 = vpop.permute.xlu0 %948
        %950 = vrot.lane.b32.xlu0 %v947, 112
        %v951 = vpop.permute.xlu0 %950
        %952 = vrot.lane.b32.xlu0 %v942, 112
        %v953 = vpop.permute.xlu0 %952
        %vm954 = vcmask 916480
        %v955 = vsel %vm954, %v949, %v951
        %v956 = vsel %vm954, %v951, %v953
        %v958 = vsel %vm288, %v944, 0
        %v960 = vsel %vm292, %v955, 0
        %v962 = vsel %vm292, %v956, 0
        %964 = vmatprep.subr.mxu0 %v962
        %965 = vmatpush1.msra.mxu0 %v960
        %966 = vmatprep.subr.mxu0 0.0
        %967 = vmatpush1.msra.mxu0 0.0
        %968 = vmatprep.subr.mxu0 0.0
        %969 = vmatpush1.msra.mxu0 0.0
        %970 = vmatprep.subr.mxu0 0.0
        %971 = vmatpush1.msra.mxu0 0.0
        %972 = vmatprep.subr.mxu0 0.0
        %973 = vmatpush1.msra.mxu0 0.0
        %974 = vmatprep.subr.mxu0 0.0
        %975 = vmatpush1.msra.mxu0 0.0
        %976 = vmatprep.subr.mxu0 0.0
        %977 = vmatpush1.msra.mxu0 0.0
        %978 = vmatprep.subr.mxu0 0.0
        %979 = vmatpush1.msra.mxu0 0.0
        %980 = vmatprep.subr.mxu0 0.0
        %981 = vmatpush1.msra.mxu0 0.0
        %982 = vmatprep.subr.mxu0 0.0
        %983 = vmatpush1.msra.mxu0 0.0
        %984 = vmatprep.subr.mxu0 0.0
        %985 = vmatpush1.msra.mxu0 0.0
        %986 = vmatprep.subr.mxu0 0.0
        %987 = vmatpush1.msra.mxu0 0.0
        %988 = vmatprep.subr.mxu0 0.0
        %989 = vmatpush1.msra.mxu0 0.0
        %990 = vmatprep.subr.mxu0 0.0
        %991 = vmatpush1.msra.mxu0 0.0
        %992 = vmatprep.subr.mxu0 0.0
        %993 = vmatpush1.msra.mxu0 0.0
        %994 = vmatprep.subr.mxu0 0.0
        %995 = vmatpush1.msra.mxu0 0.0
        %996 = vmatprep.subr.mxu0 0.0
        %997 = vmatpush1.msra.mxu0 0.0
        %998 = vmatprep.subr.mxu0 0.0
        %999 = vmatpush1.msra.mxu0 0.0
        %1000 = vmatprep.subr.mxu0 0.0
        %1001 = vmatpush1.msra.mxu0 0.0
        %1002 = vmatprep.subr.mxu0 0.0
        %1003 = vmatpush1.msra.mxu0 0.0
        %1004 = vmatprep.subr.mxu0 0.0
        %1005 = vmatpush1.msra.mxu0 0.0
        %1006 = vmatprep.subr.mxu0 0.0
        %1007 = vmatpush1.msra.mxu0 0.0
        %1008 = vmatprep.subr.mxu0 0.0
        %1009 = vmatpush1.msra.mxu0 0.0
        %1010 = vmatprep.subr.mxu0 0.0
        %1011 = vmatpush1.msra.mxu0 0.0
        %1012 = vmatprep.subr.mxu0 0.0
        %1013 = vmatpush1.msra.mxu0 0.0
        %1014 = vmatprep.subr.mxu0 0.0
        %1015 = vmatpush1.msra.mxu0 0.0
        %1016 = vmatprep.subr.mxu0 0.0
        %1017 = vmatpush1.msra.mxu0 0.0
        %1018 = vmatprep.subr.mxu0 0.0
        %1019 = vmatpush1.msra.mxu0 0.0
        %1020 = vmatprep.subr.mxu0 0.0
        %1021 = vmatpush1.msra.mxu0 0.0
        %1022 = vmatprep.subr.mxu0 0.0
        %1023 = vmatpush1.msra.mxu0 0.0
        %1024 = vmatprep.subr.mxu0 0.0
        %1025 = vmatpush1.msra.mxu0 0.0
        %1026 = vmatprep.subr.mxu0 0.0
        %1027 = vmatpush1.msra.mxu0 0.0
        %1028 = vmatprep.mubr.f32.mxu0 0.0
        %1029 = vmatmul.mubr.f32.gmra.mrb[0].mxu0 %v958
        %v1030 = vpop.f32.mrb[0].mxu0
        %v1031 = vadd.f32 0.0, %v1030
        %v1032 = vpop.f32.mrb[0].mxu0
        %v1033 = vadd.f32 0.0, %v1032
        %1034 = vdwg.mxu0
        %v1035 = vadd.f32 %v939, %v1031
        %v1036 = vadd.f32 %v940, %v1033
        %v1037 = vld [vmem:[#allocation2 + $0x4] sm:$0xff]
        %v1038 = vld [vmem:[#allocation2 + $0xc] sm:$0xf]
        %v1041 = vcombine.high %v1037, %v1037
        %1042 = vrot.lane.b32.xlu0 %v1037, 111
        %v1043 = vpop.permute.xlu0 %1042
        %1044 = vrot.lane.b32.xlu0 %v1041, 111
        %v1045 = vpop.permute.xlu0 %1044
        %1046 = vrot.lane.b32.xlu0 %v1038, 111
        %v1047 = vpop.permute.xlu0 %1046
        %vm1048 = vcmask 908288
        %v1049 = vsel %vm1048, %v1043, %v1045
        %v1050 = vsel %vm1048, %v1045, %v1047
        %v1053 = vsel %vm252, %v1049, 0.0
        %v1054 = vsel %vm253, %v1050, 0.0
        %s1055 = scalar_lea.vmem %s1, 32
        %v1056 = vld [vmem:[%s1055] sm:$0xf]
        %v1058 = vsel %vm288, %v1056, 0
        %v1061 = vsel %vm292, %v1053, 0
        %v1064 = vsel %vm292, %v1054, 0
        %1066 = vmatprep.subr.mxu0 %v1064
        %1067 = vmatpush1.msra.mxu0 %v1061
        %1068 = vmatprep.subr.mxu0 0.0
        %1069 = vmatpush1.msra.mxu0 0.0
        %1070 = vmatprep.subr.mxu0 0.0
        %1071 = vmatpush1.msra.mxu0 0.0
        %1072 = vmatprep.subr.mxu0 0.0
        %1073 = vmatpush1.msra.mxu0 0.0
        %1074 = vmatprep.subr.mxu0 0.0
        %1075 = vmatpush1.msra.mxu0 0.0
        %1076 = vmatprep.subr.mxu0 0.0
        %1077 = vmatpush1.msra.mxu0 0.0
        %1078 = vmatprep.subr.mxu0 0.0
        %1079 = vmatpush1.msra.mxu0 0.0
        %1080 = vmatprep.subr.mxu0 0.0
        %1081 = vmatpush1.msra.mxu0 0.0
        %1082 = vmatprep.subr.mxu0 0.0
        %1083 = vmatpush1.msra.mxu0 0.0
        %1084 = vmatprep.subr.mxu0 0.0
        %1085 = vmatpush1.msra.mxu0 0.0
        %1086 = vmatprep.subr.mxu0 0.0
        %1087 = vmatpush1.msra.mxu0 0.0
        %1088 = vmatprep.subr.mxu0 0.0
        %1089 = vmatpush1.msra.mxu0 0.0
        %1090 = vmatprep.subr.mxu0 0.0
        %1091 = vmatpush1.msra.mxu0 0.0
        %1092 = vmatprep.subr.mxu0 0.0
        %1093 = vmatpush1.msra.mxu0 0.0
        %1094 = vmatprep.subr.mxu0 0.0
        %1095 = vmatpush1.msra.mxu0 0.0
        %1096 = vmatprep.subr.mxu0 0.0
        %1097 = vmatpush1.msra.mxu0 0.0
        %1098 = vmatprep.subr.mxu0 0.0
        %1099 = vmatpush1.msra.mxu0 0.0
        %1100 = vmatprep.subr.mxu0 0.0
        %1101 = vmatpush1.msra.mxu0 0.0
        %1102 = vmatprep.subr.mxu0 0.0
        %1103 = vmatpush1.msra.mxu0 0.0
        %1104 = vmatprep.subr.mxu0 0.0
        %1105 = vmatpush1.msra.mxu0 0.0
        %1106 = vmatprep.subr.mxu0 0.0
        %1107 = vmatpush1.msra.mxu0 0.0
        %1108 = vmatprep.subr.mxu0 0.0
        %1109 = vmatpush1.msra.mxu0 0.0
        %1110 = vmatprep.subr.mxu0 0.0
        %1111 = vmatpush1.msra.mxu0 0.0
        %1112 = vmatprep.subr.mxu0 0.0
        %1113 = vmatpush1.msra.mxu0 0.0
        %1114 = vmatprep.subr.mxu0 0.0
        %1115 = vmatpush1.msra.mxu0 0.0
        %1116 = vmatprep.subr.mxu0 0.0
        %1117 = vmatpush1.msra.mxu0 0.0
        %1118 = vmatprep.subr.mxu0 0.0
        %1119 = vmatpush1.msra.mxu0 0.0
        %1120 = vmatprep.subr.mxu0 0.0
        %1121 = vmatpush1.msra.mxu0 0.0
        %1122 = vmatprep.subr.mxu0 0.0
        %1123 = vmatpush1.msra.mxu0 0.0
        %1124 = vmatprep.subr.mxu0 0.0
        %1125 = vmatpush1.msra.mxu0 0.0
        %1126 = vmatprep.subr.mxu0 0.0
        %1127 = vmatpush1.msra.mxu0 0.0
        %1128 = vmatprep.subr.mxu0 0.0
        %1129 = vmatpush1.msra.mxu0 0.0
        %1130 = vmatprep.mubr.f32.mxu0 0.0
        %1131 = vmatmul.mubr.f32.gmra.mrb[0].mxu0 %v1058
        %v1132 = vpop.f32.mrb[0].mxu0
        %v1133 = vadd.f32 0.0, %v1132
        %v1134 = vpop.f32.mrb[0].mxu0
        %v1135 = vadd.f32 0.0, %v1134
        %1136 = vdwg.mxu0
        %v1137 = vadd.f32 %v1035, %v1133
        %v1138 = vadd.f32 %v1036, %v1135
        %v1139 = vld [vmem:[%s2] sm:$0xf]
        %1141 = vset.pattern.permute.xlu0 0
        %1142 = vperm.xlu0 %1141, %v1139
        %v1143 = vpop.permute.xlu0 %1142
        %v1145 = vadd.f32 %v1137, %v1143
        %v1146 = vadd.f32 %v1138, %v1143
        %v1147 = vmax.f32 %v1145, 0.0
        %v1148 = vmax.f32 %v1146, 0.0
        %v1151 = vcombine.low %v1147, %v1148
        %1153 = vst [vmem:[#allocation2 + $0x4] sm:$0xff] %v1151
        %v1154 = vld [vmem:[#allocation2] sm:$0xff]
        %v1155 = vld [vmem:[#allocation2 + $0x8] sm:$0xf]
        %v1158 = vcombine.high %v1154, %v1154
        %1159 = vrot.lane.b32.xlu0 %v1154, 17
        %v1160 = vpop.permute.xlu0 %1159
        %1161 = vrot.lane.b32.xlu0 %v1158, 17
        %v1162 = vpop.permute.xlu0 %1161
        %1163 = vrot.lane.b32.xlu0 %v1155, 17
        %v1164 = vpop.permute.xlu0 %1163
        %v1165 = vsel %vm269, %v1160, %v1162
        %v1166 = vsel %vm269, %v1162, %v1164
        %v1169 = vsel %vm250, %v1165, 0.0
        %v1170 = vsel %vm251, %v1166, 0.0
        %v1171 = vld [vmem:[%s3] sm:$0xf]
        %s1172 = scalar_lea.vmem %s3, 4
        %v1173 = vld [vmem:[%s1172] sm:$0xf]
        %1174 = vrot.lane.b32.xlu0 %v1154, 16
        %v1175 = vpop.permute.xlu0 %1174
        %1176 = vrot.lane.b32.xlu0 %v1158, 16
        %v1177 = vpop.permute.xlu0 %1176
        %1178 = vrot.lane.b32.xlu0 %v1155, 16
        %v1179 = vpop.permute.xlu0 %1178
        %v1180 = vsel %vm285, %v1175, %v1177
        %v1181 = vsel %vm285, %v1177, %v1179
        %v1183 = vsel %vm288, %v1173, 0
        %v1185 = vsel %vm292, %v1180, 0
        %v1187 = vsel %vm292, %v1181, 0
        %1189 = vmatprep.subr.mxu0 %v1187
        %1190 = vmatpush1.msra.mxu0 %v1185
        %1191 = vmatprep.subr.mxu0 0.0
        %1192 = vmatpush1.msra.mxu0 0.0
        %1193 = vmatprep.subr.mxu0 0.0
        %1194 = vmatpush1.msra.mxu0 0.0
        %1195 = vmatprep.subr.mxu0 0.0
        %1196 = vmatpush1.msra.mxu0 0.0
        %1197 = vmatprep.subr.mxu0 0.0
        %1198 = vmatpush1.msra.mxu0 0.0
        %1199 = vmatprep.subr.mxu0 0.0
        %1200 = vmatpush1.msra.mxu0 0.0
        %1201 = vmatprep.subr.mxu0 0.0
        %1202 = vmatpush1.msra.mxu0 0.0
        %1203 = vmatprep.subr.mxu0 0.0
        %1204 = vmatpush1.msra.mxu0 0.0
        %1205 = vmatprep.subr.mxu0 0.0
        %1206 = vmatpush1.msra.mxu0 0.0
        %1207 = vmatprep.subr.mxu0 0.0
        %1208 = vmatpush1.msra.mxu0 0.0
        %1209 = vmatprep.subr.mxu0 0.0
        %1210 = vmatpush1.msra.mxu0 0.0
        %1211 = vmatprep.subr.mxu0 0.0
        %1212 = vmatpush1.msra.mxu0 0.0
        %1213 = vmatprep.subr.mxu0 0.0
        %1214 = vmatpush1.msra.mxu0 0.0
        %1215 = vmatprep.subr.mxu0 0.0
        %1216 = vmatpush1.msra.mxu0 0.0
        %1217 = vmatprep.subr.mxu0 0.0
        %1218 = vmatpush1.msra.mxu0 0.0
        %1219 = vmatprep.subr.mxu0 0.0
        %1220 = vmatpush1.msra.mxu0 0.0
        %1221 = vmatprep.subr.mxu0 0.0
        %1222 = vmatpush1.msra.mxu0 0.0
        %1223 = vmatprep.subr.mxu0 0.0
        %1224 = vmatpush1.msra.mxu0 0.0
        %1225 = vmatprep.subr.mxu0 0.0
        %1226 = vmatpush1.msra.mxu0 0.0
        %1227 = vmatprep.subr.mxu0 0.0
        %1228 = vmatpush1.msra.mxu0 0.0
        %1229 = vmatprep.subr.mxu0 0.0
        %1230 = vmatpush1.msra.mxu0 0.0
        %1231 = vmatprep.subr.mxu0 0.0
        %1232 = vmatpush1.msra.mxu0 0.0
        %1233 = vmatprep.subr.mxu0 0.0
        %1234 = vmatpush1.msra.mxu0 0.0
        %1235 = vmatprep.subr.mxu0 0.0
        %1236 = vmatpush1.msra.mxu0 0.0
        %1237 = vmatprep.subr.mxu0 0.0
        %1238 = vmatpush1.msra.mxu0 0.0
        %1239 = vmatprep.subr.mxu0 0.0
        %1240 = vmatpush1.msra.mxu0 0.0
        %1241 = vmatprep.subr.mxu0 0.0
        %1242 = vmatpush1.msra.mxu0 0.0
        %1243 = vmatprep.subr.mxu0 0.0
        %1244 = vmatpush1.msra.mxu0 0.0
        %1245 = vmatprep.subr.mxu0 0.0
        %1246 = vmatpush1.msra.mxu0 0.0
        %1247 = vmatprep.subr.mxu0 0.0
        %1248 = vmatpush1.msra.mxu0 0.0
        %1249 = vmatprep.subr.mxu0 0.0
        %1250 = vmatpush1.msra.mxu0 0.0
        %1251 = vmatprep.subr.mxu0 0.0
        %1252 = vmatpush1.msra.mxu0 0.0
        %1253 = vmatprep.mubr.f32.mxu0 0.0
        %1254 = vmatmul.mubr.f32.gmra.mrb[0].mxu0 %v1183
        %v1255 = vpop.f32.mrb[0].mxu0
        %v1256 = vadd.f32 0.0, %v1255
        %v1257 = vpop.f32.mrb[0].mxu0
        %v1258 = vadd.f32 0.0, %v1257
        %1259 = vdwg.mxu0
        %v1261 = vsel %vm288, %v1171, 0
        %v1264 = vsel %vm292, %v1169, 0
        %v1267 = vsel %vm292, %v1170, 0
        %1269 = vmatprep.subr.mxu0 %v1267
        %1270 = vmatpush1.msra.mxu0 %v1264
        %1271 = vmatprep.subr.mxu0 0.0
        %1272 = vmatpush1.msra.mxu0 0.0
        %1273 = vmatprep.subr.mxu0 0.0
        %1274 = vmatpush1.msra.mxu0 0.0
        %1275 = vmatprep.subr.mxu0 0.0
        %1276 = vmatpush1.msra.mxu0 0.0
        %1277 = vmatprep.subr.mxu0 0.0
        %1278 = vmatpush1.msra.mxu0 0.0
        %1279 = vmatprep.subr.mxu0 0.0
        %1280 = vmatpush1.msra.mxu0 0.0
        %1281 = vmatprep.subr.mxu0 0.0
        %1282 = vmatpush1.msra.mxu0 0.0
        %1283 = vmatprep.subr.mxu0 0.0
        %1284 = vmatpush1.msra.mxu0 0.0
        %1285 = vmatprep.subr.mxu0 0.0
        %1286 = vmatpush1.msra.mxu0 0.0
        %1287 = vmatprep.subr.mxu0 0.0
        %1288 = vmatpush1.msra.mxu0 0.0
        %1289 = vmatprep.subr.mxu0 0.0
        %1290 = vmatpush1.msra.mxu0 0.0
        %1291 = vmatprep.subr.mxu0 0.0
        %1292 = vmatpush1.msra.mxu0 0.0
        %1293 = vmatprep.subr.mxu0 0.0
        %1294 = vmatpush1.msra.mxu0 0.0
        %1295 = vmatprep.subr.mxu0 0.0
        %1296 = vmatpush1.msra.mxu0 0.0
        %1297 = vmatprep.subr.mxu0 0.0
        %1298 = vmatpush1.msra.mxu0 0.0
        %1299 = vmatprep.subr.mxu0 0.0
        %1300 = vmatpush1.msra.mxu0 0.0
        %1301 = vmatprep.subr.mxu0 0.0
        %1302 = vmatpush1.msra.mxu0 0.0
        %1303 = vmatprep.subr.mxu0 0.0
        %1304 = vmatpush1.msra.mxu0 0.0
        %1305 = vmatprep.subr.mxu0 0.0
        %1306 = vmatpush1.msra.mxu0 0.0
        %1307 = vmatprep.subr.mxu0 0.0
        %1308 = vmatpush1.msra.mxu0 0.0
        %1309 = vmatprep.subr.mxu0 0.0
        %1310 = vmatpush1.msra.mxu0 0.0
        %1311 = vmatprep.subr.mxu0 0.0
        %1312 = vmatpush1.msra.mxu0 0.0
        %1313 = vmatprep.subr.mxu0 0.0
        %1314 = vmatpush1.msra.mxu0 0.0
        %1315 = vmatprep.subr.mxu0 0.0
        %1316 = vmatpush1.msra.mxu0 0.0
        %1317 = vmatprep.subr.mxu0 0.0
        %1318 = vmatpush1.msra.mxu0 0.0
        %1319 = vmatprep.subr.mxu0 0.0
        %1320 = vmatpush1.msra.mxu0 0.0
        %1321 = vmatprep.subr.mxu0 0.0
        %1322 = vmatpush1.msra.mxu0 0.0
        %1323 = vmatprep.subr.mxu0 0.0
        %1324 = vmatpush1.msra.mxu0 0.0
        %1325 = vmatprep.subr.mxu0 0.0
        %1326 = vmatpush1.msra.mxu0 0.0
        %1327 = vmatprep.subr.mxu0 0.0
        %1328 = vmatpush1.msra.mxu0 0.0
        %1329 = vmatprep.subr.mxu0 0.0
        %1330 = vmatpush1.msra.mxu0 0.0
        %1331 = vmatprep.subr.mxu0 0.0
        %1332 = vmatpush1.msra.mxu0 0.0
        %1333 = vmatprep.mubr.f32.mxu0 0.0
        %1334 = vmatmul.mubr.f32.gmra.mrb[0].mxu0 %v1261
        %v1335 = vpop.f32.mrb[0].mxu0
        %v1336 = vadd.f32 %v1256, %v1335
        %v1337 = vpop.f32.mrb[0].mxu0
        %v1338 = vadd.f32 %v1258, %v1337
        %1339 = vdwg.mxu0
        %v1340 = vld [vmem:[#allocation2] sm:$0xff]
        %v1341 = vld [vmem:[#allocation2 + $0x8] sm:$0xf]
        %v1344 = vcombine.high %v1340, %v1340
        %1345 = vrot.lane.b32.xlu0 %v1340, 15
        %v1346 = vpop.permute.xlu0 %1345
        %1347 = vrot.lane.b32.xlu0 %v1344, 15
        %v1348 = vpop.permute.xlu0 %1347
        %1349 = vrot.lane.b32.xlu0 %v1341, 15
        %v1350 = vpop.permute.xlu0 %1349
        %v1351 = vsel %vm459, %v1346, %v1348
        %v1352 = vsel %vm459, %v1348, %v1350
        %v1355 = vsel %vm252, %v1351, 0.0
        %v1356 = vsel %vm253, %v1352, 0.0
        %s1357 = scalar_lea.vmem %s3, 8
        %v1358 = vld [vmem:[%s1357] sm:$0xf]
        %v1360 = vsel %vm288, %v1358, 0
        %v1363 = vsel %vm292, %v1355, 0
        %v1366 = vsel %vm292, %v1356, 0
        %1368 = vmatprep.subr.mxu0 %v1366
        %1369 = vmatpush1.msra.mxu0 %v1363
        %1370 = vmatprep.subr.mxu0 0.0
        %1371 = vmatpush1.msra.mxu0 0.0
        %1372 = vmatprep.subr.mxu0 0.0
        %1373 = vmatpush1.msra.mxu0 0.0
        %1374 = vmatprep.subr.mxu0 0.0
        %1375 = vmatpush1.msra.mxu0 0.0
        %1376 = vmatprep.subr.mxu0 0.0
        %1377 = vmatpush1.msra.mxu0 0.0
        %1378 = vmatprep.subr.mxu0 0.0
        %1379 = vmatpush1.msra.mxu0 0.0
        %1380 = vmatprep.subr.mxu0 0.0
        %1381 = vmatpush1.msra.mxu0 0.0
        %1382 = vmatprep.subr.mxu0 0.0
        %1383 = vmatpush1.msra.mxu0 0.0
        %1384 = vmatprep.subr.mxu0 0.0
        %1385 = vmatpush1.msra.mxu0 0.0
        %1386 = vmatprep.subr.mxu0 0.0
        %1387 = vmatpush1.msra.mxu0 0.0
        %1388 = vmatprep.subr.mxu0 0.0
        %1389 = vmatpush1.msra.mxu0 0.0
        %1390 = vmatprep.subr.mxu0 0.0
        %1391 = vmatpush1.msra.mxu0 0.0
        %1392 = vmatprep.subr.mxu0 0.0
        %1393 = vmatpush1.msra.mxu0 0.0
        %1394 = vmatprep.subr.mxu0 0.0
        %1395 = vmatpush1.msra.mxu0 0.0
        %1396 = vmatprep.subr.mxu0 0.0
        %1397 = vmatpush1.msra.mxu0 0.0
        %1398 = vmatprep.subr.mxu0 0.0
        %1399 = vmatpush1.msra.mxu0 0.0
        %1400 = vmatprep.subr.mxu0 0.0
        %1401 = vmatpush1.msra.mxu0 0.0
        %1402 = vmatprep.subr.mxu0 0.0
        %1403 = vmatpush1.msra.mxu0 0.0
        %1404 = vmatprep.subr.mxu0 0.0
        %1405 = vmatpush1.msra.mxu0 0.0
        %1406 = vmatprep.subr.mxu0 0.0
        %1407 = vmatpush1.msra.mxu0 0.0
        %1408 = vmatprep.subr.mxu0 0.0
        %1409 = vmatpush1.msra.mxu0 0.0
        %1410 = vmatprep.subr.mxu0 0.0
        %1411 = vmatpush1.msra.mxu0 0.0
        %1412 = vmatprep.subr.mxu0 0.0
        %1413 = vmatpush1.msra.mxu0 0.0
        %1414 = vmatprep.subr.mxu0 0.0
        %1415 = vmatpush1.msra.mxu0 0.0
        %1416 = vmatprep.subr.mxu0 0.0
        %1417 = vmatpush1.msra.mxu0 0.0
        %1418 = vmatprep.subr.mxu0 0.0
        %1419 = vmatpush1.msra.mxu0 0.0
        %1420 = vmatprep.subr.mxu0 0.0
        %1421 = vmatpush1.msra.mxu0 0.0
        %1422 = vmatprep.subr.mxu0 0.0
        %1423 = vmatpush1.msra.mxu0 0.0
        %1424 = vmatprep.subr.mxu0 0.0
        %1425 = vmatpush1.msra.mxu0 0.0
        %1426 = vmatprep.subr.mxu0 0.0
        %1427 = vmatpush1.msra.mxu0 0.0
        %1428 = vmatprep.subr.mxu0 0.0
        %1429 = vmatpush1.msra.mxu0 0.0
        %1430 = vmatprep.subr.mxu0 0.0
        %1431 = vmatpush1.msra.mxu0 0.0
        %1432 = vmatprep.mubr.f32.mxu0 0.0
        %1433 = vmatmul.mubr.f32.gmra.mrb[0].mxu0 %v1360
        %v1434 = vpop.f32.mrb[0].mxu0
        %v1435 = vadd.f32 0.0, %v1434
        %v1436 = vpop.f32.mrb[0].mxu0
        %v1437 = vadd.f32 0.0, %v1436
        %1438 = vdwg.mxu0
        %v1439 = vadd.f32 %v1336, %v1435
        %v1440 = vadd.f32 %v1338, %v1437
        %v1441 = vld [vmem:[#allocation2] sm:$0xff]
        %v1442 = vld [vmem:[#allocation2 + $0x8] sm:$0xf]
        %v1445 = vcombine.high %v1441, %v1441
        %1446 = vrot.lane.b32.xlu0 %v1441, 1
        %v1447 = vpop.permute.xlu0 %1446
        %1448 = vrot.lane.b32.xlu0 %v1445, 1
        %v1449 = vpop.permute.xlu0 %1448
        %1450 = vrot.lane.b32.xlu0 %v1442, 1
        %v1451 = vpop.permute.xlu0 %1450
        %v1452 = vsel %vm561, %v1447, %v1449
        %v1453 = vsel %vm561, %v1449, %v1451
        %v1456 = vsel %vm250, %v1452, 0.0
        %v1457 = vsel %vm251, %v1453, 0.0
        %s1458 = scalar_lea.vmem %s3, 12
        %v1459 = vld [vmem:[%s1458] sm:$0xf]
        %v1461 = vsel %vm288, %v1459, 0
        %v1464 = vsel %vm292, %v1456, 0
        %v1467 = vsel %vm292, %v1457, 0
        %1469 = vmatprep.subr.mxu0 %v1467
        %1470 = vmatpush1.msra.mxu0 %v1464
        %1471 = vmatprep.subr.mxu0 0.0
        %1472 = vmatpush1.msra.mxu0 0.0
        %1473 = vmatprep.subr.mxu0 0.0
        %1474 = vmatpush1.msra.mxu0 0.0
        %1475 = vmatprep.subr.mxu0 0.0
        %1476 = vmatpush1.msra.mxu0 0.0
        %1477 = vmatprep.subr.mxu0 0.0
        %1478 = vmatpush1.msra.mxu0 0.0
        %1479 = vmatprep.subr.mxu0 0.0
        %1480 = vmatpush1.msra.mxu0 0.0
        %1481 = vmatprep.subr.mxu0 0.0
        %1482 = vmatpush1.msra.mxu0 0.0
        %1483 = vmatprep.subr.mxu0 0.0
        %1484 = vmatpush1.msra.mxu0 0.0
        %1485 = vmatprep.subr.mxu0 0.0
        %1486 = vmatpush1.msra.mxu0 0.0
        %1487 = vmatprep.subr.mxu0 0.0
        %1488 = vmatpush1.msra.mxu0 0.0
        %1489 = vmatprep.subr.mxu0 0.0
        %1490 = vmatpush1.msra.mxu0 0.0
        %1491 = vmatprep.subr.mxu0 0.0
        %1492 = vmatpush1.msra.mxu0 0.0
        %1493 = vmatprep.subr.mxu0 0.0
        %1494 = vmatpush1.msra.mxu0 0.0
        %1495 = vmatprep.subr.mxu0 0.0
        %1496 = vmatpush1.msra.mxu0 0.0
        %1497 = vmatprep.subr.mxu0 0.0
        %1498 = vmatpush1.msra.mxu0 0.0
        %1499 = vmatprep.subr.mxu0 0.0
        %1500 = vmatpush1.msra.mxu0 0.0
        %1501 = vmatprep.subr.mxu0 0.0
        %1502 = vmatpush1.msra.mxu0 0.0
        %1503 = vmatprep.subr.mxu0 0.0
        %1504 = vmatpush1.msra.mxu0 0.0
        %1505 = vmatprep.subr.mxu0 0.0
        %1506 = vmatpush1.msra.mxu0 0.0
        %1507 = vmatprep.subr.mxu0 0.0
        %1508 = vmatpush1.msra.mxu0 0.0
        %1509 = vmatprep.subr.mxu0 0.0
        %1510 = vmatpush1.msra.mxu0 0.0
        %1511 = vmatprep.subr.mxu0 0.0
        %1512 = vmatpush1.msra.mxu0 0.0
        %1513 = vmatprep.subr.mxu0 0.0
        %1514 = vmatpush1.msra.mxu0 0.0
        %1515 = vmatprep.subr.mxu0 0.0
        %1516 = vmatpush1.msra.mxu0 0.0
        %1517 = vmatprep.subr.mxu0 0.0
        %1518 = vmatpush1.msra.mxu0 0.0
        %1519 = vmatprep.subr.mxu0 0.0
        %1520 = vmatpush1.msra.mxu0 0.0
        %1521 = vmatprep.subr.mxu0 0.0
        %1522 = vmatpush1.msra.mxu0 0.0
        %1523 = vmatprep.subr.mxu0 0.0
        %1524 = vmatpush1.msra.mxu0 0.0
        %1525 = vmatprep.subr.mxu0 0.0
        %1526 = vmatpush1.msra.mxu0 0.0
        %1527 = vmatprep.subr.mxu0 0.0
        %1528 = vmatpush1.msra.mxu0 0.0
        %1529 = vmatprep.subr.mxu0 0.0
        %1530 = vmatpush1.msra.mxu0 0.0
        %1531 = vmatprep.subr.mxu0 0.0
        %1532 = vmatpush1.msra.mxu0 0.0
        %1533 = vmatprep.mubr.f32.mxu0 0.0
        %1534 = vmatmul.mubr.f32.gmra.mrb[0].mxu0 %v1461
        %v1535 = vpop.f32.mrb[0].mxu0
        %v1536 = vadd.f32 0.0, %v1535
        %v1537 = vpop.f32.mrb[0].mxu0
        %v1538 = vadd.f32 0.0, %v1537
        %1539 = vdwg.mxu0
        %v1540 = vadd.f32 %v1439, %v1536
        %v1541 = vadd.f32 %v1440, %v1538
        %v1542 = vld [vmem:[#allocation2 + $0x4] sm:$0xff]
        %s1543 = scalar_lea.vmem %s3, 16
        %v1544 = vld [vmem:[%s1543] sm:$0xf]
        %v1546 = vcombine.high %v1542, %v1542
        %v1548 = vsel %vm288, %v1544, 0
        %v1550 = vsel %vm292, %v1542, 0
        %v1552 = vsel %vm292, %v1546, 0
        %1554 = vmatprep.subr.mxu0 %v1552
        %1555 = vmatpush1.msra.mxu0 %v1550
        %1556 = vmatprep.subr.mxu0 0.0
        %1557 = vmatpush1.msra.mxu0 0.0
        %1558 = vmatprep.subr.mxu0 0.0
        %1559 = vmatpush1.msra.mxu0 0.0
        %1560 = vmatprep.subr.mxu0 0.0
        %1561 = vmatpush1.msra.mxu0 0.0
        %1562 = vmatprep.subr.mxu0 0.0
        %1563 = vmatpush1.msra.mxu0 0.0
        %1564 = vmatprep.subr.mxu0 0.0
        %1565 = vmatpush1.msra.mxu0 0.0
        %1566 = vmatprep.subr.mxu0 0.0
        %1567 = vmatpush1.msra.mxu0 0.0
        %1568 = vmatprep.subr.mxu0 0.0
        %1569 = vmatpush1.msra.mxu0 0.0
        %1570 = vmatprep.subr.mxu0 0.0
        %1571 = vmatpush1.msra.mxu0 0.0
        %1572 = vmatprep.subr.mxu0 0.0
        %1573 = vmatpush1.msra.mxu0 0.0
        %1574 = vmatprep.subr.mxu0 0.0
        %1575 = vmatpush1.msra.mxu0 0.0
        %1576 = vmatprep.subr.mxu0 0.0
        %1577 = vmatpush1.msra.mxu0 0.0
        %1578 = vmatprep.subr.mxu0 0.0
        %1579 = vmatpush1.msra.mxu0 0.0
        %1580 = vmatprep.subr.mxu0 0.0
        %1581 = vmatpush1.msra.mxu0 0.0
        %1582 = vmatprep.subr.mxu0 0.0
        %1583 = vmatpush1.msra.mxu0 0.0
        %1584 = vmatprep.subr.mxu0 0.0
        %1585 = vmatpush1.msra.mxu0 0.0
        %1586 = vmatprep.subr.mxu0 0.0
        %1587 = vmatpush1.msra.mxu0 0.0
        %1588 = vmatprep.subr.mxu0 0.0
        %1589 = vmatpush1.msra.mxu0 0.0
        %1590 = vmatprep.subr.mxu0 0.0
        %1591 = vmatpush1.msra.mxu0 0.0
        %1592 = vmatprep.subr.mxu0 0.0
        %1593 = vmatpush1.msra.mxu0 0.0
        %1594 = vmatprep.subr.mxu0 0.0
        %1595 = vmatpush1.msra.mxu0 0.0
        %1596 = vmatprep.subr.mxu0 0.0
        %1597 = vmatpush1.msra.mxu0 0.0
        %1598 = vmatprep.subr.mxu0 0.0
        %1599 = vmatpush1.msra.mxu0 0.0
        %1600 = vmatprep.subr.mxu0 0.0
        %1601 = vmatpush1.msra.mxu0 0.0
        %1602 = vmatprep.subr.mxu0 0.0
        %1603 = vmatpush1.msra.mxu0 0.0
        %1604 = vmatprep.subr.mxu0 0.0
        %1605 = vmatpush1.msra.mxu0 0.0
        %1606 = vmatprep.subr.mxu0 0.0
        %1607 = vmatpush1.msra.mxu0 0.0
        %1608 = vmatprep.subr.mxu0 0.0
        %1609 = vmatpush1.msra.mxu0 0.0
        %1610 = vmatprep.subr.mxu0 0.0
        %1611 = vmatpush1.msra.mxu0 0.0
        %1612 = vmatprep.subr.mxu0 0.0
        %1613 = vmatpush1.msra.mxu0 0.0
        %1614 = vmatprep.subr.mxu0 0.0
        %1615 = vmatpush1.msra.mxu0 0.0
        %1616 = vmatprep.subr.mxu0 0.0
        %1617 = vmatpush1.msra.mxu0 0.0
        %1618 = vmatprep.mubr.f32.mxu0 0.0
        %1619 = vmatmul.mubr.f32.gmra.mrb[0].mxu0 %v1548
        %v1620 = vpop.f32.mrb[0].mxu0
        %v1621 = vadd.f32 0.0, %v1620
        %v1622 = vpop.f32.mrb[0].mxu0
        %v1623 = vadd.f32 0.0, %v1622
        %1624 = vdwg.mxu0
        %v1625 = vadd.f32 %v1540, %v1621
        %v1626 = vadd.f32 %v1541, %v1623
        %v1627 = vld [vmem:[#allocation2 + $0x4] sm:$0xff]
        %v1628 = vld [vmem:[#allocation2 + $0xc] sm:$0xf]
        %v1631 = vcombine.high %v1627, %v1627
        %1632 = vrot.lane.b32.xlu0 %v1627, 127
        %v1633 = vpop.permute.xlu0 %1632
        %1634 = vrot.lane.b32.xlu0 %v1631, 127
        %v1635 = vpop.permute.xlu0 %1634
        %1636 = vrot.lane.b32.xlu0 %v1628, 127
        %v1637 = vpop.permute.xlu0 %1636
        %v1638 = vsel %vm748, %v1633, %v1635
        %v1639 = vsel %vm748, %v1635, %v1637
        %v1642 = vsel %vm252, %v1638, 0.0
        %v1643 = vsel %vm253, %v1639, 0.0
        %s1644 = scalar_lea.vmem %s3, 20
        %v1645 = vld [vmem:[%s1644] sm:$0xf]
        %v1647 = vsel %vm288, %v1645, 0
        %v1650 = vsel %vm292, %v1642, 0
        %v1653 = vsel %vm292, %v1643, 0
        %1655 = vmatprep.subr.mxu0 %v1653
        %1656 = vmatpush1.msra.mxu0 %v1650
        %1657 = vmatprep.subr.mxu0 0.0
        %1658 = vmatpush1.msra.mxu0 0.0
        %1659 = vmatprep.subr.mxu0 0.0
        %1660 = vmatpush1.msra.mxu0 0.0
        %1661 = vmatprep.subr.mxu0 0.0
        %1662 = vmatpush1.msra.mxu0 0.0
        %1663 = vmatprep.subr.mxu0 0.0
        %1664 = vmatpush1.msra.mxu0 0.0
        %1665 = vmatprep.subr.mxu0 0.0
        %1666 = vmatpush1.msra.mxu0 0.0
        %1667 = vmatprep.subr.mxu0 0.0
        %1668 = vmatpush1.msra.mxu0 0.0
        %1669 = vmatprep.subr.mxu0 0.0
        %1670 = vmatpush1.msra.mxu0 0.0
        %1671 = vmatprep.subr.mxu0 0.0
        %1672 = vmatpush1.msra.mxu0 0.0
        %1673 = vmatprep.subr.mxu0 0.0
        %1674 = vmatpush1.msra.mxu0 0.0
        %1675 = vmatprep.subr.mxu0 0.0
        %1676 = vmatpush1.msra.mxu0 0.0
        %1677 = vmatprep.subr.mxu0 0.0
        %1678 = vmatpush1.msra.mxu0 0.0
        %1679 = vmatprep.subr.mxu0 0.0
        %1680 = vmatpush1.msra.mxu0 0.0
        %1681 = vmatprep.subr.mxu0 0.0
        %1682 = vmatpush1.msra.mxu0 0.0
        %1683 = vmatprep.subr.mxu0 0.0
        %1684 = vmatpush1.msra.mxu0 0.0
        %1685 = vmatprep.subr.mxu0 0.0
        %1686 = vmatpush1.msra.mxu0 0.0
        %1687 = vmatprep.subr.mxu0 0.0
        %1688 = vmatpush1.msra.mxu0 0.0
        %1689 = vmatprep.subr.mxu0 0.0
        %1690 = vmatpush1.msra.mxu0 0.0
        %1691 = vmatprep.subr.mxu0 0.0
        %1692 = vmatpush1.msra.mxu0 0.0
        %1693 = vmatprep.subr.mxu0 0.0
        %1694 = vmatpush1.msra.mxu0 0.0
        %1695 = vmatprep.subr.mxu0 0.0
        %1696 = vmatpush1.msra.mxu0 0.0
        %1697 = vmatprep.subr.mxu0 0.0
        %1698 = vmatpush1.msra.mxu0 0.0
        %1699 = vmatprep.subr.mxu0 0.0
        %1700 = vmatpush1.msra.mxu0 0.0
        %1701 = vmatprep.subr.mxu0 0.0
        %1702 = vmatpush1.msra.mxu0 0.0
        %1703 = vmatprep.subr.mxu0 0.0
        %1704 = vmatpush1.msra.mxu0 0.0
        %1705 = vmatprep.subr.mxu0 0.0
        %1706 = vmatpush1.msra.mxu0 0.0
        %1707 = vmatprep.subr.mxu0 0.0
        %1708 = vmatpush1.msra.mxu0 0.0
        %1709 = vmatprep.subr.mxu0 0.0
        %1710 = vmatpush1.msra.mxu0 0.0
        %1711 = vmatprep.subr.mxu0 0.0
        %1712 = vmatpush1.msra.mxu0 0.0
        %1713 = vmatprep.subr.mxu0 0.0
        %1714 = vmatpush1.msra.mxu0 0.0
        %1715 = vmatprep.subr.mxu0 0.0
        %1716 = vmatpush1.msra.mxu0 0.0
        %1717 = vmatprep.subr.mxu0 0.0
        %1718 = vmatpush1.msra.mxu0 0.0
        %1719 = vmatprep.mubr.f32.mxu0 0.0
        %1720 = vmatmul.mubr.f32.gmra.mrb[0].mxu0 %v1647
        %v1721 = vpop.f32.mrb[0].mxu0
        %v1722 = vadd.f32 0.0, %v1721
        %v1723 = vpop.f32.mrb[0].mxu0
        %v1724 = vadd.f32 0.0, %v1723
        %1725 = vdwg.mxu0
        %v1726 = vadd.f32 %v1625, %v1722
        %v1727 = vadd.f32 %v1626, %v1724
        %v1728 = vld [vmem:[#allocation2 + $0x4] sm:$0xff]
        %v1729 = vld [vmem:[#allocation2 + $0xc] sm:$0xf]
        %v1732 = vcombine.high %v1728, %v1728
        %1733 = vrot.lane.b32.xlu0 %v1728, 113
        %v1734 = vpop.permute.xlu0 %1733
        %1735 = vrot.lane.b32.xlu0 %v1732, 113
        %v1736 = vpop.permute.xlu0 %1735
        %1737 = vrot.lane.b32.xlu0 %v1729, 113
        %v1738 = vpop.permute.xlu0 %1737
        %v1739 = vsel %vm850, %v1734, %v1736
        %v1740 = vsel %vm850, %v1736, %v1738
        %v1743 = vsel %vm250, %v1739, 0.0
        %v1744 = vsel %vm251, %v1740, 0.0
        %s1745 = scalar_lea.vmem %s3, 24
        %v1746 = vld [vmem:[%s1745] sm:$0xf]
        %v1748 = vsel %vm288, %v1746, 0
        %v1751 = vsel %vm292, %v1743, 0
        %v1754 = vsel %vm292, %v1744, 0
        %1756 = vmatprep.subr.mxu0 %v1754
        %1757 = vmatpush1.msra.mxu0 %v1751
        %1758 = vmatprep.subr.mxu0 0.0
        %1759 = vmatpush1.msra.mxu0 0.0
        %1760 = vmatprep.subr.mxu0 0.0
        %1761 = vmatpush1.msra.mxu0 0.0
        %1762 = vmatprep.subr.mxu0 0.0
        %1763 = vmatpush1.msra.mxu0 0.0
        %1764 = vmatprep.subr.mxu0 0.0
        %1765 = vmatpush1.msra.mxu0 0.0
        %1766 = vmatprep.subr.mxu0 0.0
        %1767 = vmatpush1.msra.mxu0 0.0
        %1768 = vmatprep.subr.mxu0 0.0
        %1769 = vmatpush1.msra.mxu0 0.0
        %1770 = vmatprep.subr.mxu0 0.0
        %1771 = vmatpush1.msra.mxu0 0.0
        %1772 = vmatprep.subr.mxu0 0.0
        %1773 = vmatpush1.msra.mxu0 0.0
        %1774 = vmatprep.subr.mxu0 0.0
        %1775 = vmatpush1.msra.mxu0 0.0
        %1776 = vmatprep.subr.mxu0 0.0
        %1777 = vmatpush1.msra.mxu0 0.0
        %1778 = vmatprep.subr.mxu0 0.0
        %1779 = vmatpush1.msra.mxu0 0.0
        %1780 = vmatprep.subr.mxu0 0.0
        %1781 = vmatpush1.msra.mxu0 0.0
        %1782 = vmatprep.subr.mxu0 0.0
        %1783 = vmatpush1.msra.mxu0 0.0
        %1784 = vmatprep.subr.mxu0 0.0
        %1785 = vmatpush1.msra.mxu0 0.0
        %1786 = vmatprep.subr.mxu0 0.0
        %1787 = vmatpush1.msra.mxu0 0.0
        %1788 = vmatprep.subr.mxu0 0.0
        %1789 = vmatpush1.msra.mxu0 0.0
        %1790 = vmatprep.subr.mxu0 0.0
        %1791 = vmatpush1.msra.mxu0 0.0
        %1792 = vmatprep.subr.mxu0 0.0
        %1793 = vmatpush1.msra.mxu0 0.0
        %1794 = vmatprep.subr.mxu0 0.0
        %1795 = vmatpush1.msra.mxu0 0.0
        %1796 = vmatprep.subr.mxu0 0.0
        %1797 = vmatpush1.msra.mxu0 0.0
        %1798 = vmatprep.subr.mxu0 0.0
        %1799 = vmatpush1.msra.mxu0 0.0
        %1800 = vmatprep.subr.mxu0 0.0
        %1801 = vmatpush1.msra.mxu0 0.0
        %1802 = vmatprep.subr.mxu0 0.0
        %1803 = vmatpush1.msra.mxu0 0.0
        %1804 = vmatprep.subr.mxu0 0.0
        %1805 = vmatpush1.msra.mxu0 0.0
        %1806 = vmatprep.subr.mxu0 0.0
        %1807 = vmatpush1.msra.mxu0 0.0
        %1808 = vmatprep.subr.mxu0 0.0
        %1809 = vmatpush1.msra.mxu0 0.0
        %1810 = vmatprep.subr.mxu0 0.0
        %1811 = vmatpush1.msra.mxu0 0.0
        %1812 = vmatprep.subr.mxu0 0.0
        %1813 = vmatpush1.msra.mxu0 0.0
        %1814 = vmatprep.subr.mxu0 0.0
        %1815 = vmatpush1.msra.mxu0 0.0
        %1816 = vmatprep.subr.mxu0 0.0
        %1817 = vmatpush1.msra.mxu0 0.0
        %1818 = vmatprep.subr.mxu0 0.0
        %1819 = vmatpush1.msra.mxu0 0.0
        %1820 = vmatprep.mubr.f32.mxu0 0.0
        %1821 = vmatmul.mubr.f32.gmra.mrb[0].mxu0 %v1748
        %v1822 = vpop.f32.mrb[0].mxu0
        %v1823 = vadd.f32 0.0, %v1822
        %v1824 = vpop.f32.mrb[0].mxu0
        %v1825 = vadd.f32 0.0, %v1824
        %1826 = vdwg.mxu0
        %v1827 = vadd.f32 %v1726, %v1823
        %v1828 = vadd.f32 %v1727, %v1825
        %v1829 = vld [vmem:[#allocation2 + $0x4] sm:$0xff]
        %v1830 = vld [vmem:[#allocation2 + $0xc] sm:$0xf]
        %s1831 = scalar_lea.vmem %s3, 28
        %v1832 = vld [vmem:[%s1831] sm:$0xf]
        %v1835 = vcombine.high %v1829, %v1829
        %1836 = vrot.lane.b32.xlu0 %v1829, 112
        %v1837 = vpop.permute.xlu0 %1836
        %1838 = vrot.lane.b32.xlu0 %v1835, 112
        %v1839 = vpop.permute.xlu0 %1838
        %1840 = vrot.lane.b32.xlu0 %v1830, 112
        %v1841 = vpop.permute.xlu0 %1840
        %v1842 = vsel %vm954, %v1837, %v1839
        %v1843 = vsel %vm954, %v1839, %v1841
        %v1845 = vsel %vm288, %v1832, 0
        %v1847 = vsel %vm292, %v1842, 0
        %v1849 = vsel %vm292, %v1843, 0
        %1851 = vmatprep.subr.mxu0 %v1849
        %1852 = vmatpush1.msra.mxu0 %v1847
        %1853 = vmatprep.subr.mxu0 0.0
        %1854 = vmatpush1.msra.mxu0 0.0
        %1855 = vmatprep.subr.mxu0 0.0
        %1856 = vmatpush1.msra.mxu0 0.0
        %1857 = vmatprep.subr.mxu0 0.0
        %1858 = vmatpush1.msra.mxu0 0.0
        %1859 = vmatprep.subr.mxu0 0.0
        %1860 = vmatpush1.msra.mxu0 0.0
        %1861 = vmatprep.subr.mxu0 0.0
        %1862 = vmatpush1.msra.mxu0 0.0
        %1863 = vmatprep.subr.mxu0 0.0
        %1864 = vmatpush1.msra.mxu0 0.0
        %1865 = vmatprep.subr.mxu0 0.0
        %1866 = vmatpush1.msra.mxu0 0.0
        %1867 = vmatprep.subr.mxu0 0.0
        %1868 = vmatpush1.msra.mxu0 0.0
        %1869 = vmatprep.subr.mxu0 0.0
        %1870 = vmatpush1.msra.mxu0 0.0
        %1871 = vmatprep.subr.mxu0 0.0
        %1872 = vmatpush1.msra.mxu0 0.0
        %1873 = vmatprep.subr.mxu0 0.0
        %1874 = vmatpush1.msra.mxu0 0.0
        %1875 = vmatprep.subr.mxu0 0.0
        %1876 = vmatpush1.msra.mxu0 0.0
        %1877 = vmatprep.subr.mxu0 0.0
        %1878 = vmatpush1.msra.mxu0 0.0
        %1879 = vmatprep.subr.mxu0 0.0
        %1880 = vmatpush1.msra.mxu0 0.0
        %1881 = vmatprep.subr.mxu0 0.0
        %1882 = vmatpush1.msra.mxu0 0.0
        %1883 = vmatprep.subr.mxu0 0.0
        %1884 = vmatpush1.msra.mxu0 0.0
        %1885 = vmatprep.subr.mxu0 0.0
        %1886 = vmatpush1.msra.mxu0 0.0
        %1887 = vmatprep.subr.mxu0 0.0
        %1888 = vmatpush1.msra.mxu0 0.0
        %1889 = vmatprep.subr.mxu0 0.0
        %1890 = vmatpush1.msra.mxu0 0.0
        %1891 = vmatprep.subr.mxu0 0.0
        %1892 = vmatpush1.msra.mxu0 0.0
        %1893 = vmatprep.subr.mxu0 0.0
        %1894 = vmatpush1.msra.mxu0 0.0
        %1895 = vmatprep.subr.mxu0 0.0
        %1896 = vmatpush1.msra.mxu0 0.0
        %1897 = vmatprep.subr.mxu0 0.0
        %1898 = vmatpush1.msra.mxu0 0.0
        %1899 = vmatprep.subr.mxu0 0.0
        %1900 = vmatpush1.msra.mxu0 0.0
        %1901 = vmatprep.subr.mxu0 0.0
        %1902 = vmatpush1.msra.mxu0 0.0
        %1903 = vmatprep.subr.mxu0 0.0
        %1904 = vmatpush1.msra.mxu0 0.0
        %1905 = vmatprep.subr.mxu0 0.0
        %1906 = vmatpush1.msra.mxu0 0.0
        %1907 = vmatprep.subr.mxu0 0.0
        %1908 = vmatpush1.msra.mxu0 0.0
        %1909 = vmatprep.subr.mxu0 0.0
        %1910 = vmatpush1.msra.mxu0 0.0
        %1911 = vmatprep.subr.mxu0 0.0
        %1912 = vmatpush1.msra.mxu0 0.0
        %1913 = vmatprep.subr.mxu0 0.0
        %1914 = vmatpush1.msra.mxu0 0.0
        %1915 = vmatprep.mubr.f32.mxu0 0.0
        %1916 = vmatmul.mubr.f32.gmra.mrb[0].mxu0 %v1845
        %v1917 = vpop.f32.mrb[0].mxu0
        %v1918 = vadd.f32 0.0, %v1917
        %v1919 = vpop.f32.mrb[0].mxu0
        %v1920 = vadd.f32 0.0, %v1919
        %1921 = vdwg.mxu0
        %v1922 = vadd.f32 %v1827, %v1918
        %v1923 = vadd.f32 %v1828, %v1920
        %v1924 = vld [vmem:[#allocation2 + $0x4] sm:$0xff]
        %v1925 = vld [vmem:[#allocation2 + $0xc] sm:$0xf]
        %v1928 = vcombine.high %v1924, %v1924
        %1929 = vrot.lane.b32.xlu0 %v1924, 111
        %v1930 = vpop.permute.xlu0 %1929
        %1931 = vrot.lane.b32.xlu0 %v1928, 111
        %v1932 = vpop.permute.xlu0 %1931
        %1933 = vrot.lane.b32.xlu0 %v1925, 111
        %v1934 = vpop.permute.xlu0 %1933
        %v1935 = vsel %vm1048, %v1930, %v1932
        %v1936 = vsel %vm1048, %v1932, %v1934
        %v1939 = vsel %vm252, %v1935, 0.0
        %v1940 = vsel %vm253, %v1936, 0.0
        %s1941 = scalar_lea.vmem %s3, 32
        %v1942 = vld [vmem:[%s1941] sm:$0xf]
        %v1944 = vsel %vm288, %v1942, 0
        %v1947 = vsel %vm292, %v1939, 0
        %v1950 = vsel %vm292, %v1940, 0
        %1952 = vmatprep.subr.mxu0 %v1950
        %1953 = vmatpush1.msra.mxu0 %v1947
        %1954 = vmatprep.subr.mxu0 0.0
        %1955 = vmatpush1.msra.mxu0 0.0
        %1956 = vmatprep.subr.mxu0 0.0
        %1957 = vmatpush1.msra.mxu0 0.0
        %1958 = vmatprep.subr.mxu0 0.0
        %1959 = vmatpush1.msra.mxu0 0.0
        %1960 = vmatprep.subr.mxu0 0.0
        %1961 = vmatpush1.msra.mxu0 0.0
        %1962 = vmatprep.subr.mxu0 0.0
        %1963 = vmatpush1.msra.mxu0 0.0
        %1964 = vmatprep.subr.mxu0 0.0
        %1965 = vmatpush1.msra.mxu0 0.0
        %1966 = vmatprep.subr.mxu0 0.0
        %1967 = vmatpush1.msra.mxu0 0.0
        %1968 = vmatprep.subr.mxu0 0.0
        %1969 = vmatpush1.msra.mxu0 0.0
        %1970 = vmatprep.subr.mxu0 0.0
        %1971 = vmatpush1.msra.mxu0 0.0
        %1972 = vmatprep.subr.mxu0 0.0
        %1973 = vmatpush1.msra.mxu0 0.0
        %1974 = vmatprep.subr.mxu0 0.0
        %1975 = vmatpush1.msra.mxu0 0.0
        %1976 = vmatprep.subr.mxu0 0.0
        %1977 = vmatpush1.msra.mxu0 0.0
        %1978 = vmatprep.subr.mxu0 0.0
        %1979 = vmatpush1.msra.mxu0 0.0
        %1980 = vmatprep.subr.mxu0 0.0
        %1981 = vmatpush1.msra.mxu0 0.0
        %1982 = vmatprep.subr.mxu0 0.0
        %1983 = vmatpush1.msra.mxu0 0.0
        %1984 = vmatprep.subr.mxu0 0.0
        %1985 = vmatpush1.msra.mxu0 0.0
        %1986 = vmatprep.subr.mxu0 0.0
        %1987 = vmatpush1.msra.mxu0 0.0
        %1988 = vmatprep.subr.mxu0 0.0
        %1989 = vmatpush1.msra.mxu0 0.0
        %1990 = vmatprep.subr.mxu0 0.0
        %1991 = vmatpush1.msra.mxu0 0.0
        %1992 = vmatprep.subr.mxu0 0.0
        %1993 = vmatpush1.msra.mxu0 0.0
        %1994 = vmatprep.subr.mxu0 0.0
        %1995 = vmatpush1.msra.mxu0 0.0
        %1996 = vmatprep.subr.mxu0 0.0
        %1997 = vmatpush1.msra.mxu0 0.0
        %1998 = vmatprep.subr.mxu0 0.0
        %1999 = vmatpush1.msra.mxu0 0.0
        %2000 = vmatprep.subr.mxu0 0.0
        %2001 = vmatpush1.msra.mxu0 0.0
        %2002 = vmatprep.subr.mxu0 0.0
        %2003 = vmatpush1.msra.mxu0 0.0
        %2004 = vmatprep.subr.mxu0 0.0
        %2005 = vmatpush1.msra.mxu0 0.0
        %2006 = vmatprep.subr.mxu0 0.0
        %2007 = vmatpush1.msra.mxu0 0.0
        %2008 = vmatprep.subr.mxu0 0.0
        %2009 = vmatpush1.msra.mxu0 0.0
        %2010 = vmatprep.subr.mxu0 0.0
        %2011 = vmatpush1.msra.mxu0 0.0
        %2012 = vmatprep.subr.mxu0 0.0
        %2013 = vmatpush1.msra.mxu0 0.0
        %2014 = vmatprep.subr.mxu0 0.0
        %2015 = vmatpush1.msra.mxu0 0.0
        %2016 = vmatprep.mubr.f32.mxu0 0.0
        %2017 = vmatmul.mubr.f32.gmra.mrb[0].mxu0 %v1944
        %v2018 = vpop.f32.mrb[0].mxu0
        %v2019 = vadd.f32 0.0, %v2018
        %v2020 = vpop.f32.mrb[0].mxu0
        %v2021 = vadd.f32 0.0, %v2020
        %2022 = vdwg.mxu0
        %v2023 = vadd.f32 %v1922, %v2019
        %v2024 = vadd.f32 %v1923, %v2021
        %v2025 = vld [vmem:[%s4] sm:$0xf]
        %2027 = vset.pattern.permute.xlu0 0
        %2028 = vperm.xlu0 %2027, %v2025
        %v2029 = vpop.permute.xlu0 %2028
        %v2031 = vadd.f32 %v2023, %v2029
        %v2032 = vadd.f32 %v2024, %v2029
        %v2034 = vcombine.high %v256, %v256
        %v2036 = vadd.f32 %v2031, %v256
        %v2037 = vadd.f32 %v2032, %v2034
        %v2038 = vmax.f32 %v2036, 0.0
        %v2039 = vmax.f32 %v2037, 0.0
        %v2042 = vcombine.low %v2038, %v2039
        %2044 = vst [vmem:[%s217] sm:$0xff] %v2042
        %s2045 = sand.u32 %s137, 1
        %s2046 = scalar_lea.sflag [#allocation4], %s2045
        %s2047 = sand.u32 %s137, 1
        %s2048 = smul.addr %s2047, 8
        %s2049 = scalar_lea.vmem [#allocation3], %s2048
        // Predicated region
        $region41: #{tpu_custom_call.1} parent=39 // pred_check
          %p2050 = pneg %p147
        $region42: #{tpu_custom_call.1} parent=39 // pred_check_branch
          %2052 = sbr.rel (%p2050) target = $region44
        $region43: #{tpu_custom_call.1} parent=39 // pred_region
          %s2054 = ssub.s32 128, 128
          %2055 = vsyncadd %s2046, %s2054
          %s2056 = smul.addr %s19, 2
          %s2057 = smul.addr %s2056, 64
          %s2058 = scalar_lea.hbm %s5, %s2057
          %s2060 = sshll.u32 %s2049, 4
          %s2061 = int_to_ptr.vmem [resolvable:$true] %s2060
          %2063 = dma.vmem_to_hbm [thread:$0]  %s2061, 128, %s2058, %s2046
        $region44: #{tpu_custom_call.1} parent=39 // pred_fallthru
          _
      $region40: #{tpu_custom_call.1} parent=5 // pred_fallthru
        _
      %p2064 = scmp.le.s32.totalorder 2, %s14
      // Predicated region
      $region45: #{tpu_custom_call.1} parent=5 // pred_check
        %p2065 = pneg %p2064
      $region46: #{tpu_custom_call.1} parent=5 // pred_check_branch
        %2067 = sbr.rel (%p2065) target = $region48
      $region47: #{tpu_custom_call.1} parent=5 // pred_region
        %s2068 = ssub.s32 %s14, 2
        // Predicated region
        $region49: #{tpu_custom_call.1} parent=47 // pred_check
          %p2069 = pneg %p153
        $region50: #{tpu_custom_call.1} parent=47 // pred_check_branch
          %2071 = sbr.rel (%p2069) target = $region52
        $region51: #{tpu_custom_call.1} parent=47 // pred_region
          %s2072 = sand.u32 %s138, 1
          %s2073 = scalar_lea.sflag [#allocation4], %s2072
          %s2074 = sand.u32 %s138, 1
          %s2075 = smul.addr %s2074, 8
          %s2076 = scalar_lea.vmem [#allocation3], %s2075
          %2077 = dma.done %s2073, 128
        $region52: #{tpu_custom_call.1} parent=47 // pred_fallthru
          _
      $region48: #{tpu_custom_call.1} parent=5 // pred_fallthru
        _
    $region6: #{tpu_custom_call.1} parent=1 // loop_footer
      %s18 = sadd.s32 1, %s14
    $region7: #{tpu_custom_call.1} parent=1 // loop_footer_branch
      %13 = sbr.rel target = $region3
    $region8: #{tpu_custom_call.1} parent=1 // loop_exit
      _
    %2078 = vsyncpa [#allocation4], 1
    %s2079 = scalar_lea.sflag [#allocation4], 1
    %2080 = vsyncpa %s2079, 1

</llo_original>
